<compile_context>
chip_gen: v7x
topology: tpu7x:2x2x1
jax: 0.10.0
libtpu: 0.0.40
codegen_flags: <defaults>
</compile_context>

<pallas_src>
import jax
import jax.numpy as jnp
from jax.experimental import pallas as pl
from jax.experimental.pallas import tpu as pltpu


# 32 MiB scoped VMEM: >= default on every generation, safely below v7x's
# 64 MiB physical VMEM.
_VMEM_LIMIT_BYTES = 32 * 1024 * 1024


# ---------------------------------------------------------------------------
# Small-table fast path: table VMEM-resident, gather == one-hot MXU matmul.
# ---------------------------------------------------------------------------
def _make_onehot_kernel(vocab):
    def kernel(w_ref, ids_ref, o_ref):
        # w_ref:   (vocab, dim) VMEM  (same block every step -> stays resident)
        # ids_ref: (token_tile, 1) int32 VMEM
        # o_ref:   (token_tile, dim) VMEM (lane-dense output block)
        ids = ids_ref[...]                                             # (T, 1)
        iota = jax.lax.broadcasted_iota(jnp.int32, (ids.shape[0], vocab), 1)
        onehot = (ids == iota).astype(w_ref.dtype)                     # (T, V)
        o_ref[...] = jnp.dot(
            onehot,
            w_ref[...],
            preferred_element_type=jnp.float32,
            precision=jax.lax.Precision.HIGHEST,
        ).astype(o_ref.dtype)

    return kernel


def _embedding_small_table(ids_flat, weight, token_tile):
    vocab, dim = weight.shape
    num_tokens = ids_flat.shape[0]
    n_blocks = pl.cdiv(num_tokens, token_tile)
    padded = n_blocks * token_tile
    if padded != num_tokens:
        # Pad with id 0 (a valid row); padded rows are sliced off below.
        ids_flat = jnp.pad(ids_flat, (0, padded - num_tokens))
    ids2d = ids_flat.reshape(padded, 1)

    out = pl.pallas_call(
        _make_onehot_kernel(vocab),
        out_shape=jax.ShapeDtypeStruct((padded, dim), weight.dtype),
        grid_spec=pltpu.PrefetchScalarGridSpec(
            num_scalar_prefetch=0,
            grid=(n_blocks,),
            in_specs=[
                pl.BlockSpec((vocab, dim), lambda i: (0, 0)),    # resident table
                pl.BlockSpec((token_tile, 1), lambda i: (i, 0)),
            ],
            out_specs=pl.BlockSpec((token_tile, dim), lambda i: (i, 0)),
        ),
        compiler_params=pltpu.CompilerParams(
            # Independent token tiles -> v7x megacore can split them over TCs.
            dimension_semantics=("parallel",),
            vmem_limit_bytes=_VMEM_LIMIT_BYTES,
        ),
    )(weight, ids2d)
    return out[:num_tokens]


# ---------------------------------------------------------------------------
# Large-table path: HBM DMA row gather with manual double-buffered pipeline.
# ---------------------------------------------------------------------------
def _make_gather_kernel(token_tile, unroll):
    assert token_tile % unroll == 0

    def kernel(ids_ref, w_hbm, o_hbm, buf, gather_sems, out_sem):
        # ids_ref:     SMEM (padded_tokens,) int32        (scalar prefetch)
        # w_hbm:       HBM  (vocab, dim)                  (memory_space=pl.ANY)
        # o_hbm:       HBM  (padded_tokens, dim)          (memory_space=pl.ANY)
        # buf:         VMEM (2, token_tile, dim)          (gather double buffer)
        # gather_sems: DMA sems (2,)                      (one per buffer slot)
        # out_sem:     DMA sem ()                         (HBM writeback)
        blk = pl.program_id(0)
        n_blk = pl.num_programs(0)
        slot = blk % 2

        def issue_block(block_idx, slot_idx):
            base = block_idx * token_tile

            # Unrolled issue loop: unrolling lets SMEM id loads / address math
            # of later rows overlap descriptor issue of earlier rows, so the
            # vector-misc slot (not loop control) limits the issue rate.
            @pl.loop(0, token_tile // unroll)
            def _(i):
                t0 = i * unroll
                for u in range(unroll):
                    t = t0 + u
                    row = ids_ref[base + t]
                    pltpu.make_async_copy(
                        w_hbm.at[pl.ds(row, 1)],           # (1, dim) HBM row
                        buf.at[slot_idx, pl.ds(t, 1)],     # (1, dim) VMEM row
                        gather_sems.at[slot_idx],
                    ).start()

        # Prime the pipeline with block 0 on the first grid step.
        @pl.when(blk == 0)
        def _():
            issue_block(0, 0)

        # The previous block's HBM writeback reads buf[1 - slot]; drain it
        # before the next prefetch overwrites that slot.
        @pl.when(blk >= 1)
        def _():
            pltpu.make_async_copy(
                buf.at[1 - slot],
                o_hbm.at[pl.ds((blk - 1) * token_tile, token_tile)],
                out_sem,
            ).wait()

        # Prefetch the next block's rows into the other slot; overlaps this
        # block's aggregate wait + writeback.
        @pl.when(blk + 1 < n_blk)
        def _():
            issue_block(blk + 1, 1 - slot)

        # ONE aggregate wait for all token_tile row copies of this block:
        # DMA semaphores count transferred bytes, so a single block-sized
        # wait descriptor drains exactly the token_tile (1, dim) copies.
        pltpu.make_async_copy(
            buf.at[slot], buf.at[slot], gather_sems.at[slot]
        ).wait()

        # Write the gathered block straight to HBM (no VMEM->VMEM block copy,
        # no output-pipeline double buffer).
        start = pl.multiple_of(blk * token_tile, token_tile)
        writeback = pltpu.make_async_copy(
            buf.at[slot],
            o_hbm.at[pl.ds(start, token_tile)],
            out_sem,
        )
        writeback.start()

        # Last block: nothing left to overlap with -- drain the writeback.
        @pl.when(blk == n_blk - 1)
        def _():
            writeback.wait()

    return kernel


def _embedding_gather(ids_flat, weight, token_tile):
    vocab, dim = weight.shape
    itemsize = jnp.dtype(weight.dtype).itemsize
    unroll = 8

    # Cap the (2, token_tile, dim) double buffer at ~16 MiB so it fits the
    # scoped VMEM limit on every generation (incl. v7x's 64 MiB total VMEM).
    max_tile = max(8, ((16 * 1024 * 1024) // (2 * dim * itemsize)) // 8 * 8)
    token_tile = max(8, (min(int(token_tile), max_tile) // 8) * 8)

    num_tokens = ids_flat.shape[0]
    n_blocks = pl.cdiv(num_tokens, token_tile)
    padded = n_blocks * token_tile
    if padded != num_tokens:
        # Pad with id 0 (a valid row); padded rows are sliced off below.
        ids_flat = jnp.pad(ids_flat, (0, padded - num_tokens))

    out = pl.pallas_call(
        _make_gather_kernel(token_tile, unroll),
        out_shape=jax.ShapeDtypeStruct((padded, dim), weight.dtype),
        grid_spec=pltpu.PrefetchScalarGridSpec(
            num_scalar_prefetch=1,                          # ids -> SMEM
            grid=(n_blocks,),
            in_specs=[pl.BlockSpec(memory_space=pl.ANY)],   # table stays in HBM
            out_specs=pl.BlockSpec(memory_space=pl.ANY),    # manual HBM writeback
            scratch_shapes=[
                pltpu.VMEM((2, token_tile, dim), weight.dtype),
                pltpu.SemaphoreType.DMA((2,)),
                pltpu.SemaphoreType.DMA(()),
            ],
        ),
        compiler_params=pltpu.CompilerParams(
            # Sequential: the cross-step prefetch primes slot 0 at block 0.
            dimension_semantics=("arbitrary",),
            vmem_limit_bytes=_VMEM_LIMIT_BYTES,
        ),
    )(ids_flat, weight)
    return out[:num_tokens]


# ---------------------------------------------------------------------------
# Public wrapper (ParallelEmbedding.forward, world_size == 1).
# ---------------------------------------------------------------------------
def parallel_embedding(
    x,
    weight,
    *,
    token_tile=256,
    small_table_bytes=4 * 1024 * 1024,
    max_tokens_per_call=32768,
):
    """y = weight[x]; x int ids of any shape, weight (vocab, dim)."""
    vocab, dim = weight.shape
    lead_shape = x.shape
    ids = x.reshape(-1).astype(jnp.int32)
    num_tokens = ids.shape[0]

    token_tile = max(8, (int(token_tile) // 8) * 8)
    table_bytes = vocab * dim * jnp.dtype(weight.dtype).itemsize

    if table_bytes <= small_table_bytes:
        # Small/medium table: keep it VMEM-resident, skip the DMA gather.
        out_flat = _embedding_small_table(ids, weight, token_tile)
    else:
        # Large table: HBM DMA gather.  Chunk on the host so the scalar-
        # prefetched id array never exceeds SMEM capacity.
        chunks = [
            _embedding_gather(ids[s:s + max_tokens_per_call], weight, token_tile)
            for s in range(0, num_tokens, max_tokens_per_call)
        ]
        out_flat = chunks[0] if len(chunks) == 1 else jnp.concatenate(chunks, 0)

    return out_flat.reshape(*lead_shape, dim)


if __name__ == "__main__":
    # Module config (small, world_size = 1 so part_vocab_size == vocab_size).
    vocab_size = 32
    dim = 128
    batch, seq = 2, 8

    key = jax.random.PRNGKey(0)
    k_w, k_x = jax.random.split(key)

    weight = jax.random.normal(k_w, (vocab_size, dim), dtype=jnp.float32)
    x = jax.random.randint(k_x, (batch, seq), 0, vocab_size, dtype=jnp.int32)

    y_ref = weight[x]

    # Small-table fast path (VMEM-resident table, one-hot MXU gather).
    y_fast = jax.block_until_ready(parallel_embedding(x, weight))
    assert y_fast.shape == (batch, seq, dim)
    assert jnp.allclose(y_fast, y_ref, atol=1e-5, rtol=1e-5)

    # HBM DMA-gather path (forced with small_table_bytes=0), tiny tile so the
    # multi-block double-buffered prefetch + aggregate wait + manual HBM
    # writeback is exercised.  Row copies are exact -> bitwise equality.
    y_gather = jax.block_until_ready(
        parallel_embedding(x, weight, token_tile=8, small_table_bytes=0)
    )
    assert y_gather.shape == (batch, seq, dim)
    assert jnp.array_equal(y_gather, y_ref)

    print("KERNEL_OK")
</pallas_src>

<mosaic_0001>
module attributes {stable_mosaic.version = 11 : i64} {
  func.func @kernel(%arg0: i32, %arg1: memref<32x128xf32, #tpu.memory_space<vmem>>, %arg2: memref<256x1xi32, #tpu.memory_space<vmem>>, %arg3: memref<256x128xf32, #tpu.memory_space<vmem>>) attributes {dimension_semantics = [#tpu.dimension_semantics<parallel>], iteration_bounds = array<i64: 1>, scalar_prefetch = 0 : i64, scratch_operands = 0 : i64, tpu.core_type = #tpu.core_type<tc>, window_params = [{pipeline_mode = #tpu.pipeline_mode<synchronous>, transform_indices = @transform_0, window_bounds = array<i64: 32, 128>}, {transform_indices = @transform_1, window_bounds = array<i64: 256, 1>}, {transform_indices = @transform_2, window_bounds = array<i64: 256, 128>}]} {
    %c0 = arith.constant 0 : index
    %c0_0 = arith.constant 0 : index
    %0 = vector.load %arg2[%c0, %c0_0] : memref<256x1xi32, #tpu.memory_space<vmem>>, vector<256x1xi32>
    %1 = tpu.iota {dimensions = array<i32: 1>} : vector<256x32xi32>
    %2 = vector.broadcast %0 : vector<256x1xi32> to vector<256x32xi32>
    %3 = arith.cmpi eq, %2, %1 : vector<256x32xi32>
    %4 = arith.extui %3 : vector<256x32xi1> to vector<256x32xi32>
    %5 = arith.sitofp %4 : vector<256x32xi32> to vector<256x32xf32>
    %c0_1 = arith.constant 0 : index
    %c0_2 = arith.constant 0 : index
    %6 = vector.load %arg1[%c0_1, %c0_2] : memref<32x128xf32, #tpu.memory_space<vmem>>, vector<32x128xf32>
    %cst = arith.constant dense<0.000000e+00> : vector<256x128xf32>
    %7 = tpu.matmul %5, %6, %cst {dimension_numbers = #tpu.dot_dimension_numbers<[1], [0], [0], [1], [0, 0, 1, 1], [], []>, precision = #tpu.contract_precision<fp32>} : vector<256x32xf32>, vector<32x128xf32>, vector<256x128xf32> -> vector<256x128xf32>
    %c0_3 = arith.constant 0 : index
    %c0_4 = arith.constant 0 : index
    %8 = vector.load %arg3[%c0_3, %c0_4] : memref<256x128xf32, #tpu.memory_space<vmem>>, vector<256x128xf32>
    tpu.vector_store %arg3[%c0_3, %c0_4], %7 {strides = array<i32>} : memref<256x128xf32, #tpu.memory_space<vmem>>, vector<256x128xf32>,
    return
  }
  func.func @transform_0(%arg0: i32) -> (i32, i32) {
    %c0_i32 = arith.constant 0 : i32
    %c0_i32_0 = arith.constant 0 : i32
    %c0_i32_1 = arith.constant 0 : i32
    return %c0_i32, %c0_i32_0 : i32, i32
  }
  func.func @transform_1(%arg0: i32) -> (i32, i32) {
    %c0_i32 = arith.constant 0 : i32
    %c0_i32_0 = arith.constant 0 : i32
    return %arg0, %c0_i32 : i32, i32
  }
  func.func @transform_2(%arg0: i32) -> (i32, i32) {
    %c0_i32 = arith.constant 0 : i32
    %c0_i32_0 = arith.constant 0 : i32
    return %arg0, %c0_i32 : i32, i32
  }
}

</mosaic_0001>

<llo_original>
// kernel: tpu_custom_call.1
$region0: #{tpu_custom_call.1}
  #allocation0 [shape = 'u32[]', space=smem, size = 0x4, offset = 0x4, fixed_abs, tag = 'smem constant byte address 0x4 - core index']
  #allocation1 [shape = 'u32[144,128]{1,0:T(1,128)}', space=vmem, size = 0x12000, scoped, tag = 'internal scratch']
  %s0 = inlined_call_operand.vmem [shape: f32[32,128], index: 0, kind: input, shape index: {}]
  %s1 = inlined_call_operand.vmem [shape: s32[256,1], index: 1, kind: input, shape index: {}]
  %s2 = inlined_call_operand.hbm [shape: f32[256,128], index: 2, kind: output, shape index: {}]
  %s3 = sld [smem:[#allocation0]]
  $region18: #{tpu_custom_call.1} parent=0
    _
  %s5 = ssub.s32 1, %s3
  %s6 = scalar_select 0, %s5, %s3
  $region1: #{tpu_custom_call.1} parent=0
    #allocation2 [shape = 'u8[131072]{0}', space=vmem, size = 0x20000, scoped, tag = 'output window, operand 0, single buffered']
    #allocation3 [shape = 's32[1]{0}', space=sflag, size = 0x4, scoped, tag = 'scoped memory for tpu_custom_call.1']
    %7 = vsyncpa [#allocation3], 0
    // Predicated region
    $region2: #{tpu_custom_call.1} parent=1 // pred_check
      _
    $region3: #{tpu_custom_call.1} parent=1 // pred_check_branch
      %9 = sbr.rel (0) target = $region5
    $region4: #{tpu_custom_call.1} parent=1 // pred_region
      _
    $region5: #{tpu_custom_call.1} parent=1 // pred_fallthru
      _
    // Predicated region
    $region6: #{tpu_custom_call.1} parent=1 // pred_check
      _
    $region7: #{tpu_custom_call.1} parent=1 // pred_check_branch
      %11 = sbr.rel (0) target = $region9
    $region8: #{tpu_custom_call.1} parent=1 // pred_region
      _
    $region9: #{tpu_custom_call.1} parent=1 // pred_fallthru
      _
    %v12 = vld [vmem:[%s1] sm:$0xff]
    %v13 = vld [vmem:[%s1 + $0x8] sm:$0xff]
    %v14 = vld [vmem:[%s1 + $0x10] sm:$0xff]
    %v15 = vld [vmem:[%s1 + $0x18] sm:$0xff]
    %v16 = vld [vmem:[%s1 + $0x20] sm:$0xff]
    %v17 = vld [vmem:[%s1 + $0x28] sm:$0xff]
    %v18 = vld [vmem:[%s1 + $0x30] sm:$0xff]
    %v19 = vld [vmem:[%s1 + $0x38] sm:$0xff]
    %v20 = vld [vmem:[%s1 + $0x40] sm:$0xff]
    %v21 = vld [vmem:[%s1 + $0x48] sm:$0xff]
    %v22 = vld [vmem:[%s1 + $0x50] sm:$0xff]
    %v23 = vld [vmem:[%s1 + $0x58] sm:$0xff]
    %v24 = vld [vmem:[%s1 + $0x60] sm:$0xff]
    %v25 = vld [vmem:[%s1 + $0x68] sm:$0xff]
    %v26 = vld [vmem:[%s1 + $0x70] sm:$0xff]
    %v27 = vld [vmem:[%s1 + $0x78] sm:$0xff]
    %v28 = vld [vmem:[%s1 + $0x80] sm:$0xff]
    %v29 = vld [vmem:[%s1 + $0x88] sm:$0xff]
    %v30 = vld [vmem:[%s1 + $0x90] sm:$0xff]
    %v31 = vld [vmem:[%s1 + $0x98] sm:$0xff]
    %v32 = vld [vmem:[%s1 + $0xa0] sm:$0xff]
    %v33 = vld [vmem:[%s1 + $0xa8] sm:$0xff]
    %v34 = vld [vmem:[%s1 + $0xb0] sm:$0xff]
    %v35 = vld [vmem:[%s1 + $0xb8] sm:$0xff]
    %v36 = vld [vmem:[%s1 + $0xc0] sm:$0xff]
    %v37 = vld [vmem:[%s1 + $0xc8] sm:$0xff]
    %v38 = vld [vmem:[%s1 + $0xd0] sm:$0xff]
    %v39 = vld [vmem:[%s1 + $0xd8] sm:$0xff]
    %v40 = vld [vmem:[%s1 + $0xe0] sm:$0xff]
    %v41 = vld [vmem:[%s1 + $0xe8] sm:$0xff]
    %v42 = vld [vmem:[%s1 + $0xf0] sm:$0xff]
    %v43 = vld [vmem:[%s1 + $0xf8] sm:$0xff]
    %v44 = vlaneseq
    %v45 = vand.u32 %v44, 127
    %46 = vset.pattern.permute.xlu0 0
    %47 = vperm.xlu0 %46, %v12
    %v48 = vpop.permute.xlu0 %47
    %49 = vset.pattern.permute.xlu0 0
    %50 = vperm.xlu0 %49, %v13
    %v51 = vpop.permute.xlu0 %50
    %52 = vset.pattern.permute.xlu0 0
    %53 = vperm.xlu0 %52, %v14
    %v54 = vpop.permute.xlu0 %53
    %55 = vset.pattern.permute.xlu0 0
    %56 = vperm.xlu0 %55, %v15
    %v57 = vpop.permute.xlu0 %56
    %58 = vset.pattern.permute.xlu0 0
    %59 = vperm.xlu0 %58, %v16
    %v60 = vpop.permute.xlu0 %59
    %61 = vset.pattern.permute.xlu0 0
    %62 = vperm.xlu0 %61, %v17
    %v63 = vpop.permute.xlu0 %62
    %64 = vset.pattern.permute.xlu0 0
    %65 = vperm.xlu0 %64, %v18
    %v66 = vpop.permute.xlu0 %65
    %67 = vset.pattern.permute.xlu0 0
    %68 = vperm.xlu0 %67, %v19
    %v69 = vpop.permute.xlu0 %68
    %70 = vset.pattern.permute.xlu0 0
    %71 = vperm.xlu0 %70, %v20
    %v72 = vpop.permute.xlu0 %71
    %73 = vset.pattern.permute.xlu0 0
    %74 = vperm.xlu0 %73, %v21
    %v75 = vpop.permute.xlu0 %74
    %76 = vset.pattern.permute.xlu0 0
    %77 = vperm.xlu0 %76, %v22
    %v78 = vpop.permute.xlu0 %77
    %79 = vset.pattern.permute.xlu0 0
    %80 = vperm.xlu0 %79, %v23
    %v81 = vpop.permute.xlu0 %80
    %82 = vset.pattern.permute.xlu0 0
    %83 = vperm.xlu0 %82, %v24
    %v84 = vpop.permute.xlu0 %83
    %85 = vset.pattern.permute.xlu0 0
    %86 = vperm.xlu0 %85, %v25
    %v87 = vpop.permute.xlu0 %86
    %88 = vset.pattern.permute.xlu0 0
    %89 = vperm.xlu0 %88, %v26
    %v90 = vpop.permute.xlu0 %89
    %91 = vset.pattern.permute.xlu0 0
    %92 = vperm.xlu0 %91, %v27
    %v93 = vpop.permute.xlu0 %92
    %94 = vset.pattern.permute.xlu0 0
    %95 = vperm.xlu0 %94, %v28
    %v96 = vpop.permute.xlu0 %95
    %97 = vset.pattern.permute.xlu0 0
    %98 = vperm.xlu0 %97, %v29
    %v99 = vpop.permute.xlu0 %98
    %100 = vset.pattern.permute.xlu0 0
    %101 = vperm.xlu0 %100, %v30
    %v102 = vpop.permute.xlu0 %101
    %103 = vset.pattern.permute.xlu0 0
    %104 = vperm.xlu0 %103, %v31
    %v105 = vpop.permute.xlu0 %104
    %106 = vset.pattern.permute.xlu0 0
    %107 = vperm.xlu0 %106, %v32
    %v108 = vpop.permute.xlu0 %107
    %109 = vset.pattern.permute.xlu0 0
    %110 = vperm.xlu0 %109, %v33
    %v111 = vpop.permute.xlu0 %110
    %112 = vset.pattern.permute.xlu0 0
    %113 = vperm.xlu0 %112, %v34
    %v114 = vpop.permute.xlu0 %113
    %115 = vset.pattern.permute.xlu0 0
    %116 = vperm.xlu0 %115, %v35
    %v117 = vpop.permute.xlu0 %116
    %118 = vset.pattern.permute.xlu0 0
    %119 = vperm.xlu0 %118, %v36
    %v120 = vpop.permute.xlu0 %119
    %121 = vset.pattern.permute.xlu0 0
    %122 = vperm.xlu0 %121, %v37
    %v123 = vpop.permute.xlu0 %122
    %124 = vset.pattern.permute.xlu0 0
    %125 = vperm.xlu0 %124, %v38
    %v126 = vpop.permute.xlu0 %125
    %127 = vset.pattern.permute.xlu0 0
    %128 = vperm.xlu0 %127, %v39
    %v129 = vpop.permute.xlu0 %128
    %130 = vset.pattern.permute.xlu0 0
    %131 = vperm.xlu0 %130, %v40
    %v132 = vpop.permute.xlu0 %131
    %133 = vset.pattern.permute.xlu0 0
    %134 = vperm.xlu0 %133, %v41
    %v135 = vpop.permute.xlu0 %134
    %136 = vset.pattern.permute.xlu0 0
    %137 = vperm.xlu0 %136, %v42
    %v138 = vpop.permute.xlu0 %137
    %139 = vset.pattern.permute.xlu0 0
    %140 = vperm.xlu0 %139, %v43
    %v141 = vpop.permute.xlu0 %140
    %vm142 = vcmp.eq.s32.totalorder %v48, %v45
    %vm143 = vcmp.eq.s32.totalorder %v51, %v45
    %vm144 = vcmp.eq.s32.totalorder %v54, %v45
    %vm145 = vcmp.eq.s32.totalorder %v57, %v45
    %vm146 = vcmp.eq.s32.totalorder %v60, %v45
    %vm147 = vcmp.eq.s32.totalorder %v63, %v45
    %vm148 = vcmp.eq.s32.totalorder %v66, %v45
    %vm149 = vcmp.eq.s32.totalorder %v69, %v45
    %vm150 = vcmp.eq.s32.totalorder %v72, %v45
    %vm151 = vcmp.eq.s32.totalorder %v75, %v45
    %vm152 = vcmp.eq.s32.totalorder %v78, %v45
    %vm153 = vcmp.eq.s32.totalorder %v81, %v45
    %vm154 = vcmp.eq.s32.totalorder %v84, %v45
    %vm155 = vcmp.eq.s32.totalorder %v87, %v45
    %vm156 = vcmp.eq.s32.totalorder %v90, %v45
    %vm157 = vcmp.eq.s32.totalorder %v93, %v45
    %vm158 = vcmp.eq.s32.totalorder %v96, %v45
    %vm159 = vcmp.eq.s32.totalorder %v99, %v45
    %vm160 = vcmp.eq.s32.totalorder %v102, %v45
    %vm161 = vcmp.eq.s32.totalorder %v105, %v45
    %vm162 = vcmp.eq.s32.totalorder %v108, %v45
    %vm163 = vcmp.eq.s32.totalorder %v111, %v45
    %vm164 = vcmp.eq.s32.totalorder %v114, %v45
    %vm165 = vcmp.eq.s32.totalorder %v117, %v45
    %vm166 = vcmp.eq.s32.totalorder %v120, %v45
    %vm167 = vcmp.eq.s32.totalorder %v123, %v45
    %vm168 = vcmp.eq.s32.totalorder %v126, %v45
    %vm169 = vcmp.eq.s32.totalorder %v129, %v45
    %vm170 = vcmp.eq.s32.totalorder %v132, %v45
    %vm171 = vcmp.eq.s32.totalorder %v135, %v45
    %vm172 = vcmp.eq.s32.totalorder %v138, %v45
    %vm173 = vcmp.eq.s32.totalorder %v141, %v45
    %v174 = vsel %vm142, 1, 0
    %v175 = vsel %vm143, 1, 0
    %v176 = vsel %vm144, 1, 0
    %v177 = vsel %vm145, 1, 0
    %v178 = vsel %vm146, 1, 0
    %v179 = vsel %vm147, 1, 0
    %v180 = vsel %vm148, 1, 0
    %v181 = vsel %vm149, 1, 0
    %v182 = vsel %vm150, 1, 0
    %v183 = vsel %vm151, 1, 0
    %v184 = vsel %vm152, 1, 0
    %v185 = vsel %vm153, 1, 0
    %v186 = vsel %vm154, 1, 0
    %v187 = vsel %vm155, 1, 0
    %v188 = vsel %vm156, 1, 0
    %v189 = vsel %vm157, 1, 0
    %v190 = vsel %vm158, 1, 0
    %v191 = vsel %vm159, 1, 0
    %v192 = vsel %vm160, 1, 0
    %v193 = vsel %vm161, 1, 0
    %v194 = vsel %vm162, 1, 0
    %v195 = vsel %vm163, 1, 0
    %v196 = vsel %vm164, 1, 0
    %v197 = vsel %vm165, 1, 0
    %v198 = vsel %vm166, 1, 0
    %v199 = vsel %vm167, 1, 0
    %v200 = vsel %vm168, 1, 0
    %v201 = vsel %vm169, 1, 0
    %v202 = vsel %vm170, 1, 0
    %v203 = vsel %vm171, 1, 0
    %v204 = vsel %vm172, 1, 0
    %v205 = vsel %vm173, 1, 0
    %v206 = vcvt.s32.f32 %v174
    %v207 = vcvt.s32.f32 %v175
    %v208 = vcvt.s32.f32 %v176
    %v209 = vcvt.s32.f32 %v177
    %v210 = vcvt.s32.f32 %v178
    %v211 = vcvt.s32.f32 %v179
    %v212 = vcvt.s32.f32 %v180
    %v213 = vcvt.s32.f32 %v181
    %v214 = vcvt.s32.f32 %v182
    %v215 = vcvt.s32.f32 %v183
    %v216 = vcvt.s32.f32 %v184
    %v217 = vcvt.s32.f32 %v185
    %v218 = vcvt.s32.f32 %v186
    %v219 = vcvt.s32.f32 %v187
    %v220 = vcvt.s32.f32 %v188
    %v221 = vcvt.s32.f32 %v189
    %v222 = vcvt.s32.f32 %v190
    %v223 = vcvt.s32.f32 %v191
    %v224 = vcvt.s32.f32 %v192
    %v225 = vcvt.s32.f32 %v193
    %v226 = vcvt.s32.f32 %v194
    %v227 = vcvt.s32.f32 %v195
    %v228 = vcvt.s32.f32 %v196
    %v229 = vcvt.s32.f32 %v197
    %v230 = vcvt.s32.f32 %v198
    %v231 = vcvt.s32.f32 %v199
    %v232 = vcvt.s32.f32 %v200
    %v233 = vcvt.s32.f32 %v201
    %v234 = vcvt.s32.f32 %v202
    %v235 = vcvt.s32.f32 %v203
    %v236 = vcvt.s32.f32 %v204
    %v237 = vcvt.s32.f32 %v205
    %v238 = vld [vmem:[%s0] sm:$0xff]
    %v239 = vld [vmem:[%s0 + $0x8] sm:$0xff]
    %v240 = vld [vmem:[%s0 + $0x10] sm:$0xff]
    %v241 = vld [vmem:[%s0 + $0x18] sm:$0xff]
    %vm242 = vcmask 261120
    %v244 = vsel %vm242, %v206, 0
    %v247 = vsel %vm242, %v207, 0
    %v250 = vsel %vm242, %v208, 0
    %v253 = vsel %vm242, %v209, 0
    %v256 = vsel %vm242, %v210, 0
    %v259 = vsel %vm242, %v211, 0
    %v262 = vsel %vm242, %v212, 0
    %v265 = vsel %vm242, %v213, 0
    %v268 = vsel %vm242, %v214, 0
    %v271 = vsel %vm242, %v215, 0
    %v274 = vsel %vm242, %v216, 0
    %v277 = vsel %vm242, %v217, 0
    %v280 = vsel %vm242, %v218, 0
    %v283 = vsel %vm242, %v219, 0
    %v286 = vsel %vm242, %v220, 0
    %v289 = vsel %vm242, %v221, 0
    %v292 = vsel %vm242, %v222, 0
    %v295 = vsel %vm242, %v223, 0
    %v298 = vsel %vm242, %v224, 0
    %v301 = vsel %vm242, %v225, 0
    %v304 = vsel %vm242, %v226, 0
    %v307 = vsel %vm242, %v227, 0
    %v310 = vsel %vm242, %v228, 0
    %v313 = vsel %vm242, %v229, 0
    %v316 = vsel %vm242, %v230, 0
    %v319 = vsel %vm242, %v231, 0
    %v322 = vsel %vm242, %v232, 0
    %v325 = vsel %vm242, %v233, 0
    %v328 = vsel %vm242, %v234, 0
    %v331 = vsel %vm242, %v235, 0
    %v334 = vsel %vm242, %v236, 0
    %v337 = vsel %vm242, %v237, 0
    %339 = vmatprep.subr.mxu0 0.0
    %v340 = vand.u32 %v238, 4294901760
    %341 = vmatpush1.msra.mxu0 %v340
    %342 = vmatprep.subr.mxu0 0.0
    %v343 = vand.u32 %v239, 4294901760
    %344 = vmatpush1.msra.mxu0 %v343
    %345 = vmatprep.subr.mxu0 0.0
    %v346 = vand.u32 %v240, 4294901760
    %347 = vmatpush1.msra.mxu0 %v346
    %348 = vmatprep.subr.mxu0 0.0
    %v349 = vand.u32 %v241, 4294901760
    %350 = vmatpush1.msra.mxu0 %v349
    %351 = vmatprep.subr.mxu0 0.0
    %352 = vmatpush1.msra.mxu0 0.0
    %353 = vmatprep.subr.mxu0 0.0
    %354 = vmatpush1.msra.mxu0 0.0
    %355 = vmatprep.subr.mxu0 0.0
    %356 = vmatpush1.msra.mxu0 0.0
    %357 = vmatprep.subr.mxu0 0.0
    %358 = vmatpush1.msra.mxu0 0.0
    %359 = vmatprep.subr.mxu0 0.0
    %360 = vmatpush1.msra.mxu0 0.0
    %361 = vmatprep.subr.mxu0 0.0
    %362 = vmatpush1.msra.mxu0 0.0
    %363 = vmatprep.subr.mxu0 0.0
    %364 = vmatpush1.msra.mxu0 0.0
    %365 = vmatprep.subr.mxu0 0.0
    %366 = vmatpush1.msra.mxu0 0.0
    %367 = vmatprep.subr.mxu0 0.0
    %368 = vmatpush1.msra.mxu0 0.0
    %369 = vmatprep.subr.mxu0 0.0
    %370 = vmatpush1.msra.mxu0 0.0
    %371 = vmatprep.subr.mxu0 0.0
    %372 = vmatpush1.msra.mxu0 0.0
    %373 = vmatprep.subr.mxu0 0.0
    %374 = vmatpush1.msra.mxu0 0.0
    %375 = vmatprep.subr.mxu0 0.0
    %376 = vmatpush1.msra.mxu0 0.0
    %377 = vmatprep.subr.mxu0 0.0
    %378 = vmatpush1.msra.mxu0 0.0
    %379 = vmatprep.subr.mxu0 0.0
    %380 = vmatpush1.msra.mxu0 0.0
    %381 = vmatprep.subr.mxu0 0.0
    %382 = vmatpush1.msra.mxu0 0.0
    %383 = vmatprep.subr.mxu0 0.0
    %384 = vmatpush1.msra.mxu0 0.0
    %385 = vmatprep.subr.mxu0 0.0
    %386 = vmatpush1.msra.mxu0 0.0
    %387 = vmatprep.subr.mxu0 0.0
    %388 = vmatpush1.msra.mxu0 0.0
    %389 = vmatprep.subr.mxu0 0.0
    %390 = vmatpush1.msra.mxu0 0.0
    %391 = vmatprep.subr.mxu0 0.0
    %392 = vmatpush1.msra.mxu0 0.0
    %393 = vmatprep.subr.mxu0 0.0
    %394 = vmatpush1.msra.mxu0 0.0
    %395 = vmatprep.subr.mxu0 0.0
    %396 = vmatpush1.msra.mxu0 0.0
    %397 = vmatprep.subr.mxu0 0.0
    %398 = vmatpush1.msra.mxu0 0.0
    %399 = vmatprep.subr.mxu0 0.0
    %400 = vmatpush1.msra.mxu0 0.0
    %401 = vmatprep.subr.mxu0 0.0
    %402 = vmatpush1.msra.mxu0 0.0
    %403 = vmatprep.subr.mxu0 0.0
    %404 = vmatpush1.msra.mxu0 0.0
    %405 = vmatprep.subr.mxu0 0.0
    %406 = vmatpush1.msra.mxu0 0.0
    %407 = vmatprep.mubr.f32.mxu0 0.0
    %v408 = vand.u32 %v244, 4294901760
    %v409 = vsub.f32 %v244, %v408
    %v410 = vand.u32 %v409, 4294901760
    %v411 = vsub.f32 %v409, %v410
    %v412 = vand.u32 %v411, 4294901760
    %413 = vmatmul.mubr.f32.gmra.mrb[0].mxu0 %v412
    %v414 = vpop.f32.mrb[0].mxu0
    %v415 = vadd.f32 0.0, %v414
    %v416 = vpop.f32.mrb[0].mxu0
    %417 = vmatprep.mubr.f32.mxu0 0.0
    %v418 = vand.u32 %v247, 4294901760
    %v419 = vsub.f32 %v247, %v418
    %v420 = vand.u32 %v419, 4294901760
    %v421 = vsub.f32 %v419, %v420
    %v422 = vand.u32 %v421, 4294901760
    %423 = vmatmul.mubr.f32.gmra.mrb[0].mxu0 %v422
    %v424 = vpop.f32.mrb[0].mxu0
    %v425 = vadd.f32 0.0, %v424
    %v426 = vpop.f32.mrb[0].mxu0
    %427 = vmatprep.mubr.f32.mxu0 0.0
    %v428 = vand.u32 %v250, 4294901760
    %v429 = vsub.f32 %v250, %v428
    %v430 = vand.u32 %v429, 4294901760
    %v431 = vsub.f32 %v429, %v430
    %v432 = vand.u32 %v431, 4294901760
    %433 = vmatmul.mubr.f32.gmra.mrb[0].mxu0 %v432
    %v434 = vpop.f32.mrb[0].mxu0
    %v435 = vadd.f32 0.0, %v434
    %v436 = vpop.f32.mrb[0].mxu0
    %437 = vmatprep.mubr.f32.mxu0 0.0
    %v438 = vand.u32 %v253, 4294901760
    %v439 = vsub.f32 %v253, %v438
    %v440 = vand.u32 %v439, 4294901760
    %v441 = vsub.f32 %v439, %v440
    %v442 = vand.u32 %v441, 4294901760
    %443 = vmatmul.mubr.f32.gmra.mrb[0].mxu0 %v442
    %v444 = vpop.f32.mrb[0].mxu0
    %v445 = vadd.f32 0.0, %v444
    %v446 = vpop.f32.mrb[0].mxu0
    %447 = vmatprep.mubr.f32.mxu0 0.0
    %v448 = vand.u32 %v256, 4294901760
    %v449 = vsub.f32 %v256, %v448
    %v450 = vand.u32 %v449, 4294901760
    %v451 = vsub.f32 %v449, %v450
    %v452 = vand.u32 %v451, 4294901760
    %453 = vmatmul.mubr.f32.gmra.mrb[0].mxu0 %v452
    %v454 = vpop.f32.mrb[0].mxu0
    %v455 = vadd.f32 0.0, %v454
    %v456 = vpop.f32.mrb[0].mxu0
    %457 = vmatprep.mubr.f32.mxu0 0.0
    %v458 = vand.u32 %v259, 4294901760
    %v459 = vsub.f32 %v259, %v458
    %v460 = vand.u32 %v459, 4294901760
    %v461 = vsub.f32 %v459, %v460
    %v462 = vand.u32 %v461, 4294901760
    %463 = vmatmul.mubr.f32.gmra.mrb[0].mxu0 %v462
    %v464 = vpop.f32.mrb[0].mxu0
    %v465 = vadd.f32 0.0, %v464
    %v466 = vpop.f32.mrb[0].mxu0
    %467 = vmatprep.mubr.f32.mxu0 0.0
    %v468 = vand.u32 %v262, 4294901760
    %v469 = vsub.f32 %v262, %v468
    %v470 = vand.u32 %v469, 4294901760
    %v471 = vsub.f32 %v469, %v470
    %v472 = vand.u32 %v471, 4294901760
    %473 = vmatmul.mubr.f32.gmra.mrb[0].mxu0 %v472
    %v474 = vpop.f32.mrb[0].mxu0
    %v475 = vadd.f32 0.0, %v474
    %v476 = vpop.f32.mrb[0].mxu0
    %477 = vmatprep.mubr.f32.mxu0 0.0
    %v478 = vand.u32 %v265, 4294901760
    %v479 = vsub.f32 %v265, %v478
    %v480 = vand.u32 %v479, 4294901760
    %v481 = vsub.f32 %v479, %v480
    %v482 = vand.u32 %v481, 4294901760
    %483 = vmatmul.mubr.f32.gmra.mrb[0].mxu0 %v482
    %v484 = vpop.f32.mrb[0].mxu0
    %v485 = vadd.f32 0.0, %v484
    %v486 = vpop.f32.mrb[0].mxu0
    %487 = vmatprep.mubr.f32.mxu0 0.0
    %v488 = vand.u32 %v268, 4294901760
    %v489 = vsub.f32 %v268, %v488
    %v490 = vand.u32 %v489, 4294901760
    %v491 = vsub.f32 %v489, %v490
    %v492 = vand.u32 %v491, 4294901760
    %493 = vmatmul.mubr.f32.gmra.mrb[0].mxu0 %v492
    %v494 = vpop.f32.mrb[0].mxu0
    %v495 = vadd.f32 0.0, %v494
    %v496 = vpop.f32.mrb[0].mxu0
    %497 = vmatprep.mubr.f32.mxu0 0.0
    %v498 = vand.u32 %v271, 4294901760
    %v499 = vsub.f32 %v271, %v498
    %v500 = vand.u32 %v499, 4294901760
    %v501 = vsub.f32 %v499, %v500
    %v502 = vand.u32 %v501, 4294901760
    %503 = vmatmul.mubr.f32.gmra.mrb[0].mxu0 %v502
    %v504 = vpop.f32.mrb[0].mxu0
    %v505 = vadd.f32 0.0, %v504
    %v506 = vpop.f32.mrb[0].mxu0
    %507 = vmatprep.mubr.f32.mxu0 0.0
    %v508 = vand.u32 %v274, 4294901760
    %v509 = vsub.f32 %v274, %v508
    %v510 = vand.u32 %v509, 4294901760
    %v511 = vsub.f32 %v509, %v510
    %v512 = vand.u32 %v511, 4294901760
    %513 = vmatmul.mubr.f32.gmra.mrb[0].mxu0 %v512
    %v514 = vpop.f32.mrb[0].mxu0
    %v515 = vadd.f32 0.0, %v514
    %v516 = vpop.f32.mrb[0].mxu0
    %517 = vmatprep.mubr.f32.mxu0 0.0
    %v518 = vand.u32 %v277, 4294901760
    %v519 = vsub.f32 %v277, %v518
    %v520 = vand.u32 %v519, 4294901760
    %v521 = vsub.f32 %v519, %v520
    %v522 = vand.u32 %v521, 4294901760
    %523 = vmatmul.mubr.f32.gmra.mrb[0].mxu0 %v522
    %v524 = vpop.f32.mrb[0].mxu0
    %v525 = vadd.f32 0.0, %v524
    %v526 = vpop.f32.mrb[0].mxu0
    %527 = vmatprep.mubr.f32.mxu0 0.0
    %v528 = vand.u32 %v280, 4294901760
    %v529 = vsub.f32 %v280, %v528
    %v530 = vand.u32 %v529, 4294901760
    %v531 = vsub.f32 %v529, %v530
    %v532 = vand.u32 %v531, 4294901760
    %533 = vmatmul.mubr.f32.gmra.mrb[0].mxu0 %v532
    %v534 = vpop.f32.mrb[0].mxu0
    %v535 = vadd.f32 0.0, %v534
    %v536 = vpop.f32.mrb[0].mxu0
    %537 = vmatprep.mubr.f32.mxu0 0.0
    %v538 = vand.u32 %v283, 4294901760
    %v539 = vsub.f32 %v283, %v538
    %v540 = vand.u32 %v539, 4294901760
    %v541 = vsub.f32 %v539, %v540
    %v542 = vand.u32 %v541, 4294901760
    %543 = vmatmul.mubr.f32.gmra.mrb[0].mxu0 %v542
    %v544 = vpop.f32.mrb[0].mxu0
    %v545 = vadd.f32 0.0, %v544
    %v546 = vpop.f32.mrb[0].mxu0
    %547 = vmatprep.mubr.f32.mxu0 0.0
    %v548 = vand.u32 %v286, 4294901760
    %v549 = vsub.f32 %v286, %v548
    %v550 = vand.u32 %v549, 4294901760
    %v551 = vsub.f32 %v549, %v550
    %v552 = vand.u32 %v551, 4294901760
    %553 = vmatmul.mubr.f32.gmra.mrb[0].mxu0 %v552
    %v554 = vpop.f32.mrb[0].mxu0
    %v555 = vadd.f32 0.0, %v554
    %v556 = vpop.f32.mrb[0].mxu0
    %557 = vmatprep.mubr.f32.mxu0 0.0
    %v558 = vand.u32 %v289, 4294901760
    %v559 = vsub.f32 %v289, %v558
    %v560 = vand.u32 %v559, 4294901760
    %v561 = vsub.f32 %v559, %v560
    %v562 = vand.u32 %v561, 4294901760
    %563 = vmatmul.mubr.f32.gmra.mrb[0].mxu0 %v562
    %v564 = vpop.f32.mrb[0].mxu0
    %v565 = vadd.f32 0.0, %v564
    %v566 = vpop.f32.mrb[0].mxu0
    %567 = vmatprep.mubr.f32.mxu0 0.0
    %v568 = vand.u32 %v292, 4294901760
    %v569 = vsub.f32 %v292, %v568
    %v570 = vand.u32 %v569, 4294901760
    %v571 = vsub.f32 %v569, %v570
    %v572 = vand.u32 %v571, 4294901760
    %573 = vmatmul.mubr.f32.gmra.mrb[0].mxu0 %v572
    %v574 = vpop.f32.mrb[0].mxu0
    %v575 = vadd.f32 0.0, %v574
    %v576 = vpop.f32.mrb[0].mxu0
    %577 = vmatprep.mubr.f32.mxu0 0.0
    %v578 = vand.u32 %v295, 4294901760
    %v579 = vsub.f32 %v295, %v578
    %v580 = vand.u32 %v579, 4294901760
    %v581 = vsub.f32 %v579, %v580
    %v582 = vand.u32 %v581, 4294901760
    %583 = vmatmul.mubr.f32.gmra.mrb[0].mxu0 %v582
    %v584 = vpop.f32.mrb[0].mxu0
    %v585 = vadd.f32 0.0, %v584
    %v586 = vpop.f32.mrb[0].mxu0
    %587 = vmatprep.mubr.f32.mxu0 0.0
    %v588 = vand.u32 %v298, 4294901760
    %v589 = vsub.f32 %v298, %v588
    %v590 = vand.u32 %v589, 4294901760
    %v591 = vsub.f32 %v589, %v590
    %v592 = vand.u32 %v591, 4294901760
    %593 = vmatmul.mubr.f32.gmra.mrb[0].mxu0 %v592
    %v594 = vpop.f32.mrb[0].mxu0
    %v595 = vadd.f32 0.0, %v594
    %v596 = vpop.f32.mrb[0].mxu0
    %597 = vmatprep.mubr.f32.mxu0 0.0
    %v598 = vand.u32 %v301, 4294901760
    %v599 = vsub.f32 %v301, %v598
    %v600 = vand.u32 %v599, 4294901760
    %v601 = vsub.f32 %v599, %v600
    %v602 = vand.u32 %v601, 4294901760
    %603 = vmatmul.mubr.f32.gmra.mrb[0].mxu0 %v602
    %v604 = vpop.f32.mrb[0].mxu0
    %v605 = vadd.f32 0.0, %v604
    %v606 = vpop.f32.mrb[0].mxu0
    %607 = vmatprep.mubr.f32.mxu0 0.0
    %v608 = vand.u32 %v304, 4294901760
    %v609 = vsub.f32 %v304, %v608
    %v610 = vand.u32 %v609, 4294901760
    %v611 = vsub.f32 %v609, %v610
    %v612 = vand.u32 %v611, 4294901760
    %613 = vmatmul.mubr.f32.gmra.mrb[0].mxu0 %v612
    %v614 = vpop.f32.mrb[0].mxu0
    %v615 = vadd.f32 0.0, %v614
    %v616 = vpop.f32.mrb[0].mxu0
    %617 = vmatprep.mubr.f32.mxu0 0.0
    %v618 = vand.u32 %v307, 4294901760
    %v619 = vsub.f32 %v307, %v618
    %v620 = vand.u32 %v619, 4294901760
    %v621 = vsub.f32 %v619, %v620
    %v622 = vand.u32 %v621, 4294901760
    %623 = vmatmul.mubr.f32.gmra.mrb[0].mxu0 %v622
    %v624 = vpop.f32.mrb[0].mxu0
    %v625 = vadd.f32 0.0, %v624
    %v626 = vpop.f32.mrb[0].mxu0
    %627 = vmatprep.mubr.f32.mxu0 0.0
    %v628 = vand.u32 %v310, 4294901760
    %v629 = vsub.f32 %v310, %v628
    %v630 = vand.u32 %v629, 4294901760
    %v631 = vsub.f32 %v629, %v630
    %v632 = vand.u32 %v631, 4294901760
    %633 = vmatmul.mubr.f32.gmra.mrb[0].mxu0 %v632
    %v634 = vpop.f32.mrb[0].mxu0
    %v635 = vadd.f32 0.0, %v634
    %v636 = vpop.f32.mrb[0].mxu0
    %637 = vmatprep.mubr.f32.mxu0 0.0
    %v638 = vand.u32 %v313, 4294901760
    %v639 = vsub.f32 %v313, %v638
    %v640 = vand.u32 %v639, 4294901760
    %v641 = vsub.f32 %v639, %v640
    %v642 = vand.u32 %v641, 4294901760
    %643 = vmatmul.mubr.f32.gmra.mrb[0].mxu0 %v642
    %v644 = vpop.f32.mrb[0].mxu0
    %v645 = vadd.f32 0.0, %v644
    %v646 = vpop.f32.mrb[0].mxu0
    %647 = vmatprep.mubr.f32.mxu0 0.0
    %v648 = vand.u32 %v316, 4294901760
    %v649 = vsub.f32 %v316, %v648
    %v650 = vand.u32 %v649, 4294901760
    %v651 = vsub.f32 %v649, %v650
    %v652 = vand.u32 %v651, 4294901760
    %653 = vmatmul.mubr.f32.gmra.mrb[0].mxu0 %v652
    %v654 = vpop.f32.mrb[0].mxu0
    %v655 = vadd.f32 0.0, %v654
    %v656 = vpop.f32.mrb[0].mxu0
    %657 = vmatprep.mubr.f32.mxu0 0.0
    %v658 = vand.u32 %v319, 4294901760
    %v659 = vsub.f32 %v319, %v658
    %v660 = vand.u32 %v659, 4294901760
    %v661 = vsub.f32 %v659, %v660
    %v662 = vand.u32 %v661, 4294901760
    %663 = vmatmul.mubr.f32.gmra.mrb[0].mxu0 %v662
    %v664 = vpop.f32.mrb[0].mxu0
    %v665 = vadd.f32 0.0, %v664
    %v666 = vpop.f32.mrb[0].mxu0
    %667 = vmatprep.mubr.f32.mxu0 0.0
    %v668 = vand.u32 %v322, 4294901760
    %v669 = vsub.f32 %v322, %v668
    %v670 = vand.u32 %v669, 4294901760
    %v671 = vsub.f32 %v669, %v670
    %v672 = vand.u32 %v671, 4294901760
    %673 = vmatmul.mubr.f32.gmra.mrb[0].mxu0 %v672
    %v674 = vpop.f32.mrb[0].mxu0
    %v675 = vadd.f32 0.0, %v674
    %v676 = vpop.f32.mrb[0].mxu0
    %677 = vmatprep.mubr.f32.mxu0 0.0
    %v678 = vand.u32 %v325, 4294901760
    %v679 = vsub.f32 %v325, %v678
    %v680 = vand.u32 %v679, 4294901760
    %v681 = vsub.f32 %v679, %v680
    %v682 = vand.u32 %v681, 4294901760
    %683 = vmatmul.mubr.f32.gmra.mrb[0].mxu0 %v682
    %v684 = vpop.f32.mrb[0].mxu0
    %v685 = vadd.f32 0.0, %v684
    %v686 = vpop.f32.mrb[0].mxu0
    %687 = vmatprep.mubr.f32.mxu0 0.0
    %v688 = vand.u32 %v328, 4294901760
    %v689 = vsub.f32 %v328, %v688
    %v690 = vand.u32 %v689, 4294901760
    %v691 = vsub.f32 %v689, %v690
    %v692 = vand.u32 %v691, 4294901760
    %693 = vmatmul.mubr.f32.gmra.mrb[0].mxu0 %v692
    %v694 = vpop.f32.mrb[0].mxu0
    %v695 = vadd.f32 0.0, %v694
    %v696 = vpop.f32.mrb[0].mxu0
    %697 = vmatprep.mubr.f32.mxu0 0.0
    %v698 = vand.u32 %v331, 4294901760
    %v699 = vsub.f32 %v331, %v698
    %v700 = vand.u32 %v699, 4294901760
    %v701 = vsub.f32 %v699, %v700
    %v702 = vand.u32 %v701, 4294901760
    %703 = vmatmul.mubr.f32.gmra.mrb[0].mxu0 %v702
    %v704 = vpop.f32.mrb[0].mxu0
    %v705 = vadd.f32 0.0, %v704
    %v706 = vpop.f32.mrb[0].mxu0
    %707 = vmatprep.mubr.f32.mxu0 0.0
    %v708 = vand.u32 %v334, 4294901760
    %v709 = vsub.f32 %v334, %v708
    %v710 = vand.u32 %v709, 4294901760
    %v711 = vsub.f32 %v709, %v710
    %v712 = vand.u32 %v711, 4294901760
    %713 = vmatmul.mubr.f32.gmra.mrb[0].mxu0 %v712
    %v714 = vpop.f32.mrb[0].mxu0
    %v715 = vadd.f32 0.0, %v714
    %v716 = vpop.f32.mrb[0].mxu0
    %717 = vmatprep.mubr.f32.mxu0 0.0
    %v718 = vand.u32 %v337, 4294901760
    %v719 = vsub.f32 %v337, %v718
    %v720 = vand.u32 %v719, 4294901760
    %v721 = vsub.f32 %v719, %v720
    %v722 = vand.u32 %v721, 4294901760
    %723 = vmatmul.mubr.f32.gmra.mrb[0].mxu0 %v722
    %v724 = vpop.f32.mrb[0].mxu0
    %v725 = vadd.f32 0.0, %v724
    %v726 = vpop.f32.mrb[0].mxu0
    %727 = vdwg.mxu0
    %728 = vmatprep.subr.mxu0 0.0
    %v729 = vand.u32 %v238, 4294901760
    %v730 = vsub.f32 %v238, %v729
    %v731 = vand.u32 %v730, 4294901760
    %v732 = vsub.f32 %v730, %v731
    %v733 = vand.u32 %v732, 4294901760
    %734 = vmatpush1.msra.mxu0 %v733
    %735 = vmatprep.subr.mxu0 0.0
    %v736 = vand.u32 %v239, 4294901760
    %v737 = vsub.f32 %v239, %v736
    %v738 = vand.u32 %v737, 4294901760
    %v739 = vsub.f32 %v737, %v738
    %v740 = vand.u32 %v739, 4294901760
    %741 = vmatpush1.msra.mxu0 %v740
    %742 = vmatprep.subr.mxu0 0.0
    %v743 = vand.u32 %v240, 4294901760
    %v744 = vsub.f32 %v240, %v743
    %v745 = vand.u32 %v744, 4294901760
    %v746 = vsub.f32 %v744, %v745
    %v747 = vand.u32 %v746, 4294901760
    %748 = vmatpush1.msra.mxu0 %v747
    %749 = vmatprep.subr.mxu0 0.0
    %v750 = vand.u32 %v241, 4294901760
    %v751 = vsub.f32 %v241, %v750
    %v752 = vand.u32 %v751, 4294901760
    %v753 = vsub.f32 %v751, %v752
    %v754 = vand.u32 %v753, 4294901760
    %755 = vmatpush1.msra.mxu0 %v754
    %756 = vmatprep.subr.mxu0 0.0
    %757 = vmatpush1.msra.mxu0 0.0
    %758 = vmatprep.subr.mxu0 0.0
    %759 = vmatpush1.msra.mxu0 0.0
    %760 = vmatprep.subr.mxu0 0.0
    %761 = vmatpush1.msra.mxu0 0.0
    %762 = vmatprep.subr.mxu0 0.0
    %763 = vmatpush1.msra.mxu0 0.0
    %764 = vmatprep.subr.mxu0 0.0
    %765 = vmatpush1.msra.mxu0 0.0
    %766 = vmatprep.subr.mxu0 0.0
    %767 = vmatpush1.msra.mxu0 0.0
    %768 = vmatprep.subr.mxu0 0.0
    %769 = vmatpush1.msra.mxu0 0.0
    %770 = vmatprep.subr.mxu0 0.0
    %771 = vmatpush1.msra.mxu0 0.0
    %772 = vmatprep.subr.mxu0 0.0
    %773 = vmatpush1.msra.mxu0 0.0
    %774 = vmatprep.subr.mxu0 0.0
    %775 = vmatpush1.msra.mxu0 0.0
    %776 = vmatprep.subr.mxu0 0.0
    %777 = vmatpush1.msra.mxu0 0.0
    %778 = vmatprep.subr.mxu0 0.0
    %779 = vmatpush1.msra.mxu0 0.0
    %780 = vmatprep.subr.mxu0 0.0
    %781 = vmatpush1.msra.mxu0 0.0
    %782 = vmatprep.subr.mxu0 0.0
    %783 = vmatpush1.msra.mxu0 0.0
    %784 = vmatprep.subr.mxu0 0.0
    %785 = vmatpush1.msra.mxu0 0.0
    %786 = vmatprep.subr.mxu0 0.0
    %787 = vmatpush1.msra.mxu0 0.0
    %788 = vmatprep.subr.mxu0 0.0
    %789 = vmatpush1.msra.mxu0 0.0
    %790 = vmatprep.subr.mxu0 0.0
    %791 = vmatpush1.msra.mxu0 0.0
    %792 = vmatprep.subr.mxu0 0.0
    %793 = vmatpush1.msra.mxu0 0.0
    %794 = vmatprep.subr.mxu0 0.0
    %795 = vmatpush1.msra.mxu0 0.0
    %796 = vmatprep.subr.mxu0 0.0
    %797 = vmatpush1.msra.mxu0 0.0
    %798 = vmatprep.subr.mxu0 0.0
    %799 = vmatpush1.msra.mxu0 0.0
    %800 = vmatprep.subr.mxu0 0.0
    %801 = vmatpush1.msra.mxu0 0.0
    %802 = vmatprep.subr.mxu0 0.0
    %803 = vmatpush1.msra.mxu0 0.0
    %804 = vmatprep.subr.mxu0 0.0
    %805 = vmatpush1.msra.mxu0 0.0
    %806 = vmatprep.subr.mxu0 0.0
    %807 = vmatpush1.msra.mxu0 0.0
    %808 = vmatprep.subr.mxu0 0.0
    %809 = vmatpush1.msra.mxu0 0.0
    %810 = vmatprep.subr.mxu0 0.0
    %811 = vmatpush1.msra.mxu0 0.0
    %812 = vmatprep.mubr.f32.mxu0 0.0
    %v813 = vand.u32 %v244, 4294901760
    %814 = vmatmul.mubr.f32.gmra.mrb[0].mxu0 %v813
    %v815 = vpop.f32.mrb[0].mxu0
    %v816 = vadd.f32 %v415, %v815
    %v817 = vpop.f32.mrb[0].mxu0
    %818 = vmatprep.mubr.f32.mxu0 0.0
    %v819 = vand.u32 %v247, 4294901760
    %820 = vmatmul.mubr.f32.gmra.mrb[0].mxu0 %v819
    %v821 = vpop.f32.mrb[0].mxu0
    %v822 = vadd.f32 %v425, %v821
    %v823 = vpop.f32.mrb[0].mxu0
    %824 = vmatprep.mubr.f32.mxu0 0.0
    %v825 = vand.u32 %v250, 4294901760
    %826 = vmatmul.mubr.f32.gmra.mrb[0].mxu0 %v825
    %v827 = vpop.f32.mrb[0].mxu0
    %v828 = vadd.f32 %v435, %v827
    %v829 = vpop.f32.mrb[0].mxu0
    %830 = vmatprep.mubr.f32.mxu0 0.0
    %v831 = vand.u32 %v253, 4294901760
    %832 = vmatmul.mubr.f32.gmra.mrb[0].mxu0 %v831
    %v833 = vpop.f32.mrb[0].mxu0
    %v834 = vadd.f32 %v445, %v833
    %v835 = vpop.f32.mrb[0].mxu0
    %836 = vmatprep.mubr.f32.mxu0 0.0
    %v837 = vand.u32 %v256, 4294901760
    %838 = vmatmul.mubr.f32.gmra.mrb[0].mxu0 %v837
    %v839 = vpop.f32.mrb[0].mxu0
    %v840 = vadd.f32 %v455, %v839
    %v841 = vpop.f32.mrb[0].mxu0
    %842 = vmatprep.mubr.f32.mxu0 0.0
    %v843 = vand.u32 %v259, 4294901760
    %844 = vmatmul.mubr.f32.gmra.mrb[0].mxu0 %v843
    %v845 = vpop.f32.mrb[0].mxu0
    %v846 = vadd.f32 %v465, %v845
    %v847 = vpop.f32.mrb[0].mxu0
    %848 = vmatprep.mubr.f32.mxu0 0.0
    %v849 = vand.u32 %v262, 4294901760
    %850 = vmatmul.mubr.f32.gmra.mrb[0].mxu0 %v849
    %v851 = vpop.f32.mrb[0].mxu0
    %v852 = vadd.f32 %v475, %v851
    %v853 = vpop.f32.mrb[0].mxu0
    %854 = vmatprep.mubr.f32.mxu0 0.0
    %v855 = vand.u32 %v265, 4294901760
    %856 = vmatmul.mubr.f32.gmra.mrb[0].mxu0 %v855
    %v857 = vpop.f32.mrb[0].mxu0
    %v858 = vadd.f32 %v485, %v857
    %v859 = vpop.f32.mrb[0].mxu0
    %860 = vmatprep.mubr.f32.mxu0 0.0
    %v861 = vand.u32 %v268, 4294901760
    %862 = vmatmul.mubr.f32.gmra.mrb[0].mxu0 %v861
    %v863 = vpop.f32.mrb[0].mxu0
    %v864 = vadd.f32 %v495, %v863
    %v865 = vpop.f32.mrb[0].mxu0
    %866 = vmatprep.mubr.f32.mxu0 0.0
    %v867 = vand.u32 %v271, 4294901760
    %868 = vmatmul.mubr.f32.gmra.mrb[0].mxu0 %v867
    %v869 = vpop.f32.mrb[0].mxu0
    %v870 = vadd.f32 %v505, %v869
    %v871 = vpop.f32.mrb[0].mxu0
    %872 = vmatprep.mubr.f32.mxu0 0.0
    %v873 = vand.u32 %v274, 4294901760
    %874 = vmatmul.mubr.f32.gmra.mrb[0].mxu0 %v873
    %v875 = vpop.f32.mrb[0].mxu0
    %v876 = vadd.f32 %v515, %v875
    %v877 = vpop.f32.mrb[0].mxu0
    %878 = vmatprep.mubr.f32.mxu0 0.0
    %v879 = vand.u32 %v277, 4294901760
    %880 = vmatmul.mubr.f32.gmra.mrb[0].mxu0 %v879
    %v881 = vpop.f32.mrb[0].mxu0
    %v882 = vadd.f32 %v525, %v881
    %v883 = vpop.f32.mrb[0].mxu0
    %884 = vmatprep.mubr.f32.mxu0 0.0
    %v885 = vand.u32 %v280, 4294901760
    %886 = vmatmul.mubr.f32.gmra.mrb[0].mxu0 %v885
    %v887 = vpop.f32.mrb[0].mxu0
    %v888 = vadd.f32 %v535, %v887
    %v889 = vpop.f32.mrb[0].mxu0
    %890 = vmatprep.mubr.f32.mxu0 0.0
    %v891 = vand.u32 %v283, 4294901760
    %892 = vmatmul.mubr.f32.gmra.mrb[0].mxu0 %v891
    %v893 = vpop.f32.mrb[0].mxu0
    %v894 = vadd.f32 %v545, %v893
    %v895 = vpop.f32.mrb[0].mxu0
    %896 = vmatprep.mubr.f32.mxu0 0.0
    %v897 = vand.u32 %v286, 4294901760
    %898 = vmatmul.mubr.f32.gmra.mrb[0].mxu0 %v897
    %v899 = vpop.f32.mrb[0].mxu0
    %v900 = vadd.f32 %v555, %v899
    %v901 = vpop.f32.mrb[0].mxu0
    %902 = vmatprep.mubr.f32.mxu0 0.0
    %v903 = vand.u32 %v289, 4294901760
    %904 = vmatmul.mubr.f32.gmra.mrb[0].mxu0 %v903
    %v905 = vpop.f32.mrb[0].mxu0
    %v906 = vadd.f32 %v565, %v905
    %v907 = vpop.f32.mrb[0].mxu0
    %908 = vmatprep.mubr.f32.mxu0 0.0
    %v909 = vand.u32 %v292, 4294901760
    %910 = vmatmul.mubr.f32.gmra.mrb[0].mxu0 %v909
    %v911 = vpop.f32.mrb[0].mxu0
    %v912 = vadd.f32 %v575, %v911
    %v913 = vpop.f32.mrb[0].mxu0
    %914 = vmatprep.mubr.f32.mxu0 0.0
    %v915 = vand.u32 %v295, 4294901760
    %916 = vmatmul.mubr.f32.gmra.mrb[0].mxu0 %v915
    %v917 = vpop.f32.mrb[0].mxu0
    %v918 = vadd.f32 %v585, %v917
    %v919 = vpop.f32.mrb[0].mxu0
    %920 = vmatprep.mubr.f32.mxu0 0.0
    %v921 = vand.u32 %v298, 4294901760
    %922 = vmatmul.mubr.f32.gmra.mrb[0].mxu0 %v921
    %v923 = vpop.f32.mrb[0].mxu0
    %v924 = vadd.f32 %v595, %v923
    %v925 = vpop.f32.mrb[0].mxu0
    %926 = vmatprep.mubr.f32.mxu0 0.0
    %v927 = vand.u32 %v301, 4294901760
    %928 = vmatmul.mubr.f32.gmra.mrb[0].mxu0 %v927
    %v929 = vpop.f32.mrb[0].mxu0
    %v930 = vadd.f32 %v605, %v929
    %v931 = vpop.f32.mrb[0].mxu0
    %932 = vmatprep.mubr.f32.mxu0 0.0
    %v933 = vand.u32 %v304, 4294901760
    %934 = vmatmul.mubr.f32.gmra.mrb[0].mxu0 %v933
    %v935 = vpop.f32.mrb[0].mxu0
    %v936 = vadd.f32 %v615, %v935
    %v937 = vpop.f32.mrb[0].mxu0
    %938 = vmatprep.mubr.f32.mxu0 0.0
    %v939 = vand.u32 %v307, 4294901760
    %940 = vmatmul.mubr.f32.gmra.mrb[0].mxu0 %v939
    %v941 = vpop.f32.mrb[0].mxu0
    %v942 = vadd.f32 %v625, %v941
    %v943 = vpop.f32.mrb[0].mxu0
    %944 = vmatprep.mubr.f32.mxu0 0.0
    %v945 = vand.u32 %v310, 4294901760
    %946 = vmatmul.mubr.f32.gmra.mrb[0].mxu0 %v945
    %v947 = vpop.f32.mrb[0].mxu0
    %v948 = vadd.f32 %v635, %v947
    %v949 = vpop.f32.mrb[0].mxu0
    %950 = vmatprep.mubr.f32.mxu0 0.0
    %v951 = vand.u32 %v313, 4294901760
    %952 = vmatmul.mubr.f32.gmra.mrb[0].mxu0 %v951
    %v953 = vpop.f32.mrb[0].mxu0
    %v954 = vadd.f32 %v645, %v953
    %v955 = vpop.f32.mrb[0].mxu0
    %956 = vmatprep.mubr.f32.mxu0 0.0
    %v957 = vand.u32 %v316, 4294901760
    %958 = vmatmul.mubr.f32.gmra.mrb[0].mxu0 %v957
    %v959 = vpop.f32.mrb[0].mxu0
    %v960 = vadd.f32 %v655, %v959
    %v961 = vpop.f32.mrb[0].mxu0
    %962 = vmatprep.mubr.f32.mxu0 0.0
    %v963 = vand.u32 %v319, 4294901760
    %964 = vmatmul.mubr.f32.gmra.mrb[0].mxu0 %v963
    %v965 = vpop.f32.mrb[0].mxu0
    %v966 = vadd.f32 %v665, %v965
    %v967 = vpop.f32.mrb[0].mxu0
    %968 = vmatprep.mubr.f32.mxu0 0.0
    %v969 = vand.u32 %v322, 4294901760
    %970 = vmatmul.mubr.f32.gmra.mrb[0].mxu0 %v969
    %v971 = vpop.f32.mrb[0].mxu0
    %v972 = vadd.f32 %v675, %v971
    %v973 = vpop.f32.mrb[0].mxu0
    %974 = vmatprep.mubr.f32.mxu0 0.0
    %v975 = vand.u32 %v325, 4294901760
    %976 = vmatmul.mubr.f32.gmra.mrb[0].mxu0 %v975
    %v977 = vpop.f32.mrb[0].mxu0
    %v978 = vadd.f32 %v685, %v977
    %v979 = vpop.f32.mrb[0].mxu0
    %980 = vmatprep.mubr.f32.mxu0 0.0
    %v981 = vand.u32 %v328, 4294901760
    %982 = vmatmul.mubr.f32.gmra.mrb[0].mxu0 %v981
    %v983 = vpop.f32.mrb[0].mxu0
    %v984 = vadd.f32 %v695, %v983
    %v985 = vpop.f32.mrb[0].mxu0
    %986 = vmatprep.mubr.f32.mxu0 0.0
    %v987 = vand.u32 %v331, 4294901760
    %988 = vmatmul.mubr.f32.gmra.mrb[0].mxu0 %v987
    %v989 = vpop.f32.mrb[0].mxu0
    %v990 = vadd.f32 %v705, %v989
    %v991 = vpop.f32.mrb[0].mxu0
    %992 = vmatprep.mubr.f32.mxu0 0.0
    %v993 = vand.u32 %v334, 4294901760
    %994 = vmatmul.mubr.f32.gmra.mrb[0].mxu0 %v993
    %v995 = vpop.f32.mrb[0].mxu0
    %v996 = vadd.f32 %v715, %v995
    %v997 = vpop.f32.mrb[0].mxu0
    %998 = vmatprep.mubr.f32.mxu0 0.0
    %v999 = vand.u32 %v337, 4294901760
    %1000 = vmatmul.mubr.f32.gmra.mrb[0].mxu0 %v999
    %v1001 = vpop.f32.mrb[0].mxu0
    %v1002 = vadd.f32 %v725, %v1001
    %v1003 = vpop.f32.mrb[0].mxu0
    %1004 = vdwg.mxu0
    %1005 = vmatprep.subr.mxu0 0.0
    %v1006 = vand.u32 %v238, 4294901760
    %v1007 = vsub.f32 %v238, %v1006
    %1008 = vmatpush1.msra.mxu0 %v1007
    %1009 = vmatprep.subr.mxu0 0.0
    %v1010 = vand.u32 %v239, 4294901760
    %v1011 = vsub.f32 %v239, %v1010
    %1012 = vmatpush1.msra.mxu0 %v1011
    %1013 = vmatprep.subr.mxu0 0.0
    %v1014 = vand.u32 %v240, 4294901760
    %v1015 = vsub.f32 %v240, %v1014
    %1016 = vmatpush1.msra.mxu0 %v1015
    %1017 = vmatprep.subr.mxu0 0.0
    %v1018 = vand.u32 %v241, 4294901760
    %v1019 = vsub.f32 %v241, %v1018
    %1020 = vmatpush1.msra.mxu0 %v1019
    %1021 = vmatprep.subr.mxu0 0.0
    %1022 = vmatpush1.msra.mxu0 0.0
    %1023 = vmatprep.subr.mxu0 0.0
    %1024 = vmatpush1.msra.mxu0 0.0
    %1025 = vmatprep.subr.mxu0 0.0
    %1026 = vmatpush1.msra.mxu0 0.0
    %1027 = vmatprep.subr.mxu0 0.0
    %1028 = vmatpush1.msra.mxu0 0.0
    %1029 = vmatprep.subr.mxu0 0.0
    %1030 = vmatpush1.msra.mxu0 0.0
    %1031 = vmatprep.subr.mxu0 0.0
    %1032 = vmatpush1.msra.mxu0 0.0
    %1033 = vmatprep.subr.mxu0 0.0
    %1034 = vmatpush1.msra.mxu0 0.0
    %1035 = vmatprep.subr.mxu0 0.0
    %1036 = vmatpush1.msra.mxu0 0.0
    %1037 = vmatprep.subr.mxu0 0.0
    %1038 = vmatpush1.msra.mxu0 0.0
    %1039 = vmatprep.subr.mxu0 0.0
    %1040 = vmatpush1.msra.mxu0 0.0
    %1041 = vmatprep.subr.mxu0 0.0
    %1042 = vmatpush1.msra.mxu0 0.0
    %1043 = vmatprep.subr.mxu0 0.0
    %1044 = vmatpush1.msra.mxu0 0.0
    %1045 = vmatprep.subr.mxu0 0.0
    %1046 = vmatpush1.msra.mxu0 0.0
    %1047 = vmatprep.subr.mxu0 0.0
    %1048 = vmatpush1.msra.mxu0 0.0
    %1049 = vmatprep.subr.mxu0 0.0
    %1050 = vmatpush1.msra.mxu0 0.0
    %1051 = vmatprep.subr.mxu0 0.0
    %1052 = vmatpush1.msra.mxu0 0.0
    %1053 = vmatprep.subr.mxu0 0.0
    %1054 = vmatpush1.msra.mxu0 0.0
    %1055 = vmatprep.subr.mxu0 0.0
    %1056 = vmatpush1.msra.mxu0 0.0
    %1057 = vmatprep.subr.mxu0 0.0
    %1058 = vmatpush1.msra.mxu0 0.0
    %1059 = vmatprep.subr.mxu0 0.0
    %1060 = vmatpush1.msra.mxu0 0.0
    %1061 = vmatprep.subr.mxu0 0.0
    %1062 = vmatpush1.msra.mxu0 0.0
    %1063 = vmatprep.subr.mxu0 0.0
    %1064 = vmatpush1.msra.mxu0 0.0
    %1065 = vmatprep.subr.mxu0 0.0
    %1066 = vmatpush1.msra.mxu0 0.0
    %1067 = vmatprep.subr.mxu0 0.0
    %1068 = vmatpush1.msra.mxu0 0.0
    %1069 = vmatprep.subr.mxu0 0.0
    %1070 = vmatpush1.msra.mxu0 0.0
    %1071 = vmatprep.subr.mxu0 0.0
    %1072 = vmatpush1.msra.mxu0 0.0
    %1073 = vmatprep.subr.mxu0 0.0
    %1074 = vmatpush1.msra.mxu0 0.0
    %1075 = vmatprep.subr.mxu0 0.0
    %1076 = vmatpush1.msra.mxu0 0.0
    %1077 = vmatprep.mubr.f32.mxu0 0.0
    %v1078 = vand.u32 %v244, 4294901760
    %v1079 = vsub.f32 %v244, %v1078
    %1080 = vmatmul.mubr.f32.gmra.mrb[0].mxu0 %v1079
    %v1081 = vpop.f32.mrb[0].mxu0
    %v1082 = vadd.f32 %v816, %v1081
    %v1083 = vpop.f32.mrb[0].mxu0
    %1084 = vmatprep.mubr.f32.mxu0 0.0
    %v1085 = vand.u32 %v247, 4294901760
    %v1086 = vsub.f32 %v247, %v1085
    %1087 = vmatmul.mubr.f32.gmra.mrb[0].mxu0 %v1086
    %v1088 = vpop.f32.mrb[0].mxu0
    %v1089 = vadd.f32 %v822, %v1088
    %v1090 = vpop.f32.mrb[0].mxu0
    %1091 = vmatprep.mubr.f32.mxu0 0.0
    %v1092 = vand.u32 %v250, 4294901760
    %v1093 = vsub.f32 %v250, %v1092
    %1094 = vmatmul.mubr.f32.gmra.mrb[0].mxu0 %v1093
    %v1095 = vpop.f32.mrb[0].mxu0
    %v1096 = vadd.f32 %v828, %v1095
    %v1097 = vpop.f32.mrb[0].mxu0
    %1098 = vmatprep.mubr.f32.mxu0 0.0
    %v1099 = vand.u32 %v253, 4294901760
    %v1100 = vsub.f32 %v253, %v1099
    %1101 = vmatmul.mubr.f32.gmra.mrb[0].mxu0 %v1100
    %v1102 = vpop.f32.mrb[0].mxu0
    %v1103 = vadd.f32 %v834, %v1102
    %v1104 = vpop.f32.mrb[0].mxu0
    %1105 = vmatprep.mubr.f32.mxu0 0.0
    %v1106 = vand.u32 %v256, 4294901760
    %v1107 = vsub.f32 %v256, %v1106
    %1108 = vmatmul.mubr.f32.gmra.mrb[0].mxu0 %v1107
    %v1109 = vpop.f32.mrb[0].mxu0
    %v1110 = vadd.f32 %v840, %v1109
    %v1111 = vpop.f32.mrb[0].mxu0
    %1112 = vmatprep.mubr.f32.mxu0 0.0
    %v1113 = vand.u32 %v259, 4294901760
    %v1114 = vsub.f32 %v259, %v1113
    %1115 = vmatmul.mubr.f32.gmra.mrb[0].mxu0 %v1114
    %v1116 = vpop.f32.mrb[0].mxu0
    %v1117 = vadd.f32 %v846, %v1116
    %v1118 = vpop.f32.mrb[0].mxu0
    %1119 = vmatprep.mubr.f32.mxu0 0.0
    %v1120 = vand.u32 %v262, 4294901760
    %v1121 = vsub.f32 %v262, %v1120
    %1122 = vmatmul.mubr.f32.gmra.mrb[0].mxu0 %v1121
    %v1123 = vpop.f32.mrb[0].mxu0
    %v1124 = vadd.f32 %v852, %v1123
    %v1125 = vpop.f32.mrb[0].mxu0
    %1126 = vmatprep.mubr.f32.mxu0 0.0
    %v1127 = vand.u32 %v265, 4294901760
    %v1128 = vsub.f32 %v265, %v1127
    %1129 = vmatmul.mubr.f32.gmra.mrb[0].mxu0 %v1128
    %v1130 = vpop.f32.mrb[0].mxu0
    %v1131 = vadd.f32 %v858, %v1130
    %v1132 = vpop.f32.mrb[0].mxu0
    %1133 = vmatprep.mubr.f32.mxu0 0.0
    %v1134 = vand.u32 %v268, 4294901760
    %v1135 = vsub.f32 %v268, %v1134
    %1136 = vmatmul.mubr.f32.gmra.mrb[0].mxu0 %v1135
    %v1137 = vpop.f32.mrb[0].mxu0
    %v1138 = vadd.f32 %v864, %v1137
    %v1139 = vpop.f32.mrb[0].mxu0
    %1140 = vmatprep.mubr.f32.mxu0 0.0
    %v1141 = vand.u32 %v271, 4294901760
    %v1142 = vsub.f32 %v271, %v1141
    %1143 = vmatmul.mubr.f32.gmra.mrb[0].mxu0 %v1142
    %v1144 = vpop.f32.mrb[0].mxu0
    %v1145 = vadd.f32 %v870, %v1144
    %v1146 = vpop.f32.mrb[0].mxu0
    %1147 = vmatprep.mubr.f32.mxu0 0.0
    %v1148 = vand.u32 %v274, 4294901760
    %v1149 = vsub.f32 %v274, %v1148
    %1150 = vmatmul.mubr.f32.gmra.mrb[0].mxu0 %v1149
    %v1151 = vpop.f32.mrb[0].mxu0
    %v1152 = vadd.f32 %v876, %v1151
    %v1153 = vpop.f32.mrb[0].mxu0
    %1154 = vmatprep.mubr.f32.mxu0 0.0
    %v1155 = vand.u32 %v277, 4294901760
    %v1156 = vsub.f32 %v277, %v1155
    %1157 = vmatmul.mubr.f32.gmra.mrb[0].mxu0 %v1156
    %v1158 = vpop.f32.mrb[0].mxu0
    %v1159 = vadd.f32 %v882, %v1158
    %v1160 = vpop.f32.mrb[0].mxu0
    %1161 = vmatprep.mubr.f32.mxu0 0.0
    %v1162 = vand.u32 %v280, 4294901760
    %v1163 = vsub.f32 %v280, %v1162
    %1164 = vmatmul.mubr.f32.gmra.mrb[0].mxu0 %v1163
    %v1165 = vpop.f32.mrb[0].mxu0
    %v1166 = vadd.f32 %v888, %v1165
    %v1167 = vpop.f32.mrb[0].mxu0
    %1168 = vmatprep.mubr.f32.mxu0 0.0
    %v1169 = vand.u32 %v283, 4294901760
    %v1170 = vsub.f32 %v283, %v1169
    %1171 = vmatmul.mubr.f32.gmra.mrb[0].mxu0 %v1170
    %v1172 = vpop.f32.mrb[0].mxu0
    %v1173 = vadd.f32 %v894, %v1172
    %v1174 = vpop.f32.mrb[0].mxu0
    %1175 = vmatprep.mubr.f32.mxu0 0.0
    %v1176 = vand.u32 %v286, 4294901760
    %v1177 = vsub.f32 %v286, %v1176
    %1178 = vmatmul.mubr.f32.gmra.mrb[0].mxu0 %v1177
    %v1179 = vpop.f32.mrb[0].mxu0
    %v1180 = vadd.f32 %v900, %v1179
    %v1181 = vpop.f32.mrb[0].mxu0
    %1182 = vmatprep.mubr.f32.mxu0 0.0
    %v1183 = vand.u32 %v289, 4294901760
    %v1184 = vsub.f32 %v289, %v1183
    %1185 = vmatmul.mubr.f32.gmra.mrb[0].mxu0 %v1184
    %v1186 = vpop.f32.mrb[0].mxu0
    %v1187 = vadd.f32 %v906, %v1186
    %v1188 = vpop.f32.mrb[0].mxu0
    %1189 = vmatprep.mubr.f32.mxu0 0.0
    %v1190 = vand.u32 %v292, 4294901760
    %v1191 = vsub.f32 %v292, %v1190
    %1192 = vmatmul.mubr.f32.gmra.mrb[0].mxu0 %v1191
    %v1193 = vpop.f32.mrb[0].mxu0
    %v1194 = vadd.f32 %v912, %v1193
    %v1195 = vpop.f32.mrb[0].mxu0
    %1196 = vmatprep.mubr.f32.mxu0 0.0
    %v1197 = vand.u32 %v295, 4294901760
    %v1198 = vsub.f32 %v295, %v1197
    %1199 = vmatmul.mubr.f32.gmra.mrb[0].mxu0 %v1198
    %v1200 = vpop.f32.mrb[0].mxu0
    %v1201 = vadd.f32 %v918, %v1200
    %v1202 = vpop.f32.mrb[0].mxu0
    %1203 = vmatprep.mubr.f32.mxu0 0.0
    %v1204 = vand.u32 %v298, 4294901760
    %v1205 = vsub.f32 %v298, %v1204
    %1206 = vmatmul.mubr.f32.gmra.mrb[0].mxu0 %v1205
    %v1207 = vpop.f32.mrb[0].mxu0
    %v1208 = vadd.f32 %v924, %v1207
    %v1209 = vpop.f32.mrb[0].mxu0
    %1210 = vmatprep.mubr.f32.mxu0 0.0
    %v1211 = vand.u32 %v301, 4294901760
    %v1212 = vsub.f32 %v301, %v1211
    %1213 = vmatmul.mubr.f32.gmra.mrb[0].mxu0 %v1212
    %v1214 = vpop.f32.mrb[0].mxu0
    %v1215 = vadd.f32 %v930, %v1214
    %v1216 = vpop.f32.mrb[0].mxu0
    %1217 = vmatprep.mubr.f32.mxu0 0.0
    %v1218 = vand.u32 %v304, 4294901760
    %v1219 = vsub.f32 %v304, %v1218
    %1220 = vmatmul.mubr.f32.gmra.mrb[0].mxu0 %v1219
    %v1221 = vpop.f32.mrb[0].mxu0
    %v1222 = vadd.f32 %v936, %v1221
    %v1223 = vpop.f32.mrb[0].mxu0
    %1224 = vmatprep.mubr.f32.mxu0 0.0
    %v1225 = vand.u32 %v307, 4294901760
    %v1226 = vsub.f32 %v307, %v1225
    %1227 = vmatmul.mubr.f32.gmra.mrb[0].mxu0 %v1226
    %v1228 = vpop.f32.mrb[0].mxu0
    %v1229 = vadd.f32 %v942, %v1228
    %v1230 = vpop.f32.mrb[0].mxu0
    %1231 = vmatprep.mubr.f32.mxu0 0.0
    %v1232 = vand.u32 %v310, 4294901760
    %v1233 = vsub.f32 %v310, %v1232
    %1234 = vmatmul.mubr.f32.gmra.mrb[0].mxu0 %v1233
    %v1235 = vpop.f32.mrb[0].mxu0
    %v1236 = vadd.f32 %v948, %v1235
    %v1237 = vpop.f32.mrb[0].mxu0
    %1238 = vmatprep.mubr.f32.mxu0 0.0
    %v1239 = vand.u32 %v313, 4294901760
    %v1240 = vsub.f32 %v313, %v1239
    %1241 = vmatmul.mubr.f32.gmra.mrb[0].mxu0 %v1240
    %v1242 = vpop.f32.mrb[0].mxu0
    %v1243 = vadd.f32 %v954, %v1242
    %v1244 = vpop.f32.mrb[0].mxu0
    %1245 = vmatprep.mubr.f32.mxu0 0.0
    %v1246 = vand.u32 %v316, 4294901760
    %v1247 = vsub.f32 %v316, %v1246
    %1248 = vmatmul.mubr.f32.gmra.mrb[0].mxu0 %v1247
    %v1249 = vpop.f32.mrb[0].mxu0
    %v1250 = vadd.f32 %v960, %v1249
    %v1251 = vpop.f32.mrb[0].mxu0
    %1252 = vmatprep.mubr.f32.mxu0 0.0
    %v1253 = vand.u32 %v319, 4294901760
    %v1254 = vsub.f32 %v319, %v1253
    %1255 = vmatmul.mubr.f32.gmra.mrb[0].mxu0 %v1254
    %v1256 = vpop.f32.mrb[0].mxu0
    %v1257 = vadd.f32 %v966, %v1256
    %v1258 = vpop.f32.mrb[0].mxu0
    %1259 = vmatprep.mubr.f32.mxu0 0.0
    %v1260 = vand.u32 %v322, 4294901760
    %v1261 = vsub.f32 %v322, %v1260
    %1262 = vmatmul.mubr.f32.gmra.mrb[0].mxu0 %v1261
    %v1263 = vpop.f32.mrb[0].mxu0
    %v1264 = vadd.f32 %v972, %v1263
    %v1265 = vpop.f32.mrb[0].mxu0
    %1266 = vmatprep.mubr.f32.mxu0 0.0
    %v1267 = vand.u32 %v325, 4294901760
    %v1268 = vsub.f32 %v325, %v1267
    %1269 = vmatmul.mubr.f32.gmra.mrb[0].mxu0 %v1268
    %v1270 = vpop.f32.mrb[0].mxu0
    %v1271 = vadd.f32 %v978, %v1270
    %v1272 = vpop.f32.mrb[0].mxu0
    %1273 = vmatprep.mubr.f32.mxu0 0.0
    %v1274 = vand.u32 %v328, 4294901760
    %v1275 = vsub.f32 %v328, %v1274
    %1276 = vmatmul.mubr.f32.gmra.mrb[0].mxu0 %v1275
    %v1277 = vpop.f32.mrb[0].mxu0
    %v1278 = vadd.f32 %v984, %v1277
    %v1279 = vpop.f32.mrb[0].mxu0
    %1280 = vmatprep.mubr.f32.mxu0 0.0
    %v1281 = vand.u32 %v331, 4294901760
    %v1282 = vsub.f32 %v331, %v1281
    %1283 = vmatmul.mubr.f32.gmra.mrb[0].mxu0 %v1282
    %v1284 = vpop.f32.mrb[0].mxu0
    %v1285 = vadd.f32 %v990, %v1284
    %v1286 = vpop.f32.mrb[0].mxu0
    %1287 = vmatprep.mubr.f32.mxu0 0.0
    %v1288 = vand.u32 %v334, 4294901760
    %v1289 = vsub.f32 %v334, %v1288
    %1290 = vmatmul.mubr.f32.gmra.mrb[0].mxu0 %v1289
    %v1291 = vpop.f32.mrb[0].mxu0
    %v1292 = vadd.f32 %v996, %v1291
    %v1293 = vpop.f32.mrb[0].mxu0
    %1294 = vmatprep.mubr.f32.mxu0 0.0
    %v1295 = vand.u32 %v337, 4294901760
    %v1296 = vsub.f32 %v337, %v1295
    %1297 = vmatmul.mubr.f32.gmra.mrb[0].mxu0 %v1296
    %v1298 = vpop.f32.mrb[0].mxu0
    %v1299 = vadd.f32 %v1002, %v1298
    %v1300 = vpop.f32.mrb[0].mxu0
    %1301 = vdwg.mxu0
    %1302 = vmatprep.subr.mxu0 0.0
    %v1303 = vand.u32 %v238, 4294901760
    %1304 = vmatpush1.msra.mxu0 %v1303
    %1305 = vmatprep.subr.mxu0 0.0
    %v1306 = vand.u32 %v239, 4294901760
    %1307 = vmatpush1.msra.mxu0 %v1306
    %1308 = vmatprep.subr.mxu0 0.0
    %v1309 = vand.u32 %v240, 4294901760
    %1310 = vmatpush1.msra.mxu0 %v1309
    %1311 = vmatprep.subr.mxu0 0.0
    %v1312 = vand.u32 %v241, 4294901760
    %1313 = vmatpush1.msra.mxu0 %v1312
    %1314 = vmatprep.subr.mxu0 0.0
    %1315 = vmatpush1.msra.mxu0 0.0
    %1316 = vmatprep.subr.mxu0 0.0
    %1317 = vmatpush1.msra.mxu0 0.0
    %1318 = vmatprep.subr.mxu0 0.0
    %1319 = vmatpush1.msra.mxu0 0.0
    %1320 = vmatprep.subr.mxu0 0.0
    %1321 = vmatpush1.msra.mxu0 0.0
    %1322 = vmatprep.subr.mxu0 0.0
    %1323 = vmatpush1.msra.mxu0 0.0
    %1324 = vmatprep.subr.mxu0 0.0
    %1325 = vmatpush1.msra.mxu0 0.0
    %1326 = vmatprep.subr.mxu0 0.0
    %1327 = vmatpush1.msra.mxu0 0.0
    %1328 = vmatprep.subr.mxu0 0.0
    %1329 = vmatpush1.msra.mxu0 0.0
    %1330 = vmatprep.subr.mxu0 0.0
    %1331 = vmatpush1.msra.mxu0 0.0
    %1332 = vmatprep.subr.mxu0 0.0
    %1333 = vmatpush1.msra.mxu0 0.0
    %1334 = vmatprep.subr.mxu0 0.0
    %1335 = vmatpush1.msra.mxu0 0.0
    %1336 = vmatprep.subr.mxu0 0.0
    %1337 = vmatpush1.msra.mxu0 0.0
    %1338 = vmatprep.subr.mxu0 0.0
    %1339 = vmatpush1.msra.mxu0 0.0
    %1340 = vmatprep.subr.mxu0 0.0
    %1341 = vmatpush1.msra.mxu0 0.0
    %1342 = vmatprep.subr.mxu0 0.0
    %1343 = vmatpush1.msra.mxu0 0.0
    %1344 = vmatprep.subr.mxu0 0.0
    %1345 = vmatpush1.msra.mxu0 0.0
    %1346 = vmatprep.subr.mxu0 0.0
    %1347 = vmatpush1.msra.mxu0 0.0
    %1348 = vmatprep.subr.mxu0 0.0
    %1349 = vmatpush1.msra.mxu0 0.0
    %1350 = vmatprep.subr.mxu0 0.0
    %1351 = vmatpush1.msra.mxu0 0.0
    %1352 = vmatprep.subr.mxu0 0.0
    %1353 = vmatpush1.msra.mxu0 0.0
    %1354 = vmatprep.subr.mxu0 0.0
    %1355 = vmatpush1.msra.mxu0 0.0
    %1356 = vmatprep.subr.mxu0 0.0
    %1357 = vmatpush1.msra.mxu0 0.0
    %1358 = vmatprep.subr.mxu0 0.0
    %1359 = vmatpush1.msra.mxu0 0.0
    %1360 = vmatprep.subr.mxu0 0.0
    %1361 = vmatpush1.msra.mxu0 0.0
    %1362 = vmatprep.subr.mxu0 0.0
    %1363 = vmatpush1.msra.mxu0 0.0
    %1364 = vmatprep.subr.mxu0 0.0
    %1365 = vmatpush1.msra.mxu0 0.0
    %1366 = vmatprep.subr.mxu0 0.0
    %1367 = vmatpush1.msra.mxu0 0.0
    %1368 = vmatprep.subr.mxu0 0.0
    %1369 = vmatpush1.msra.mxu0 0.0
    %1370 = vmatprep.mubr.f32.mxu0 0.0
    %v1371 = vand.u32 %v244, 4294901760
    %v1372 = vsub.f32 %v244, %v1371
    %v1373 = vand.u32 %v1372, 4294901760
    %1374 = vmatmul.mubr.f32.gmra.mrb[0].mxu0 %v1373
    %v1375 = vpop.f32.mrb[0].mxu0
    %v1376 = vadd.f32 %v1082, %v1375
    %v1377 = vpop.f32.mrb[0].mxu0
    %1378 = vmatprep.mubr.f32.mxu0 0.0
    %v1379 = vand.u32 %v247, 4294901760
    %v1380 = vsub.f32 %v247, %v1379
    %v1381 = vand.u32 %v1380, 4294901760
    %1382 = vmatmul.mubr.f32.gmra.mrb[0].mxu0 %v1381
    %v1383 = vpop.f32.mrb[0].mxu0
    %v1384 = vadd.f32 %v1089, %v1383
    %v1385 = vpop.f32.mrb[0].mxu0
    %1386 = vmatprep.mubr.f32.mxu0 0.0
    %v1387 = vand.u32 %v250, 4294901760
    %v1388 = vsub.f32 %v250, %v1387
    %v1389 = vand.u32 %v1388, 4294901760
    %1390 = vmatmul.mubr.f32.gmra.mrb[0].mxu0 %v1389
    %v1391 = vpop.f32.mrb[0].mxu0
    %v1392 = vadd.f32 %v1096, %v1391
    %v1393 = vpop.f32.mrb[0].mxu0
    %1394 = vmatprep.mubr.f32.mxu0 0.0
    %v1395 = vand.u32 %v253, 4294901760
    %v1396 = vsub.f32 %v253, %v1395
    %v1397 = vand.u32 %v1396, 4294901760
    %1398 = vmatmul.mubr.f32.gmra.mrb[0].mxu0 %v1397
    %v1399 = vpop.f32.mrb[0].mxu0
    %v1400 = vadd.f32 %v1103, %v1399
    %v1401 = vpop.f32.mrb[0].mxu0
    %1402 = vmatprep.mubr.f32.mxu0 0.0
    %v1403 = vand.u32 %v256, 4294901760
    %v1404 = vsub.f32 %v256, %v1403
    %v1405 = vand.u32 %v1404, 4294901760
    %1406 = vmatmul.mubr.f32.gmra.mrb[0].mxu0 %v1405
    %v1407 = vpop.f32.mrb[0].mxu0
    %v1408 = vadd.f32 %v1110, %v1407
    %v1409 = vpop.f32.mrb[0].mxu0
    %1410 = vmatprep.mubr.f32.mxu0 0.0
    %v1411 = vand.u32 %v259, 4294901760
    %v1412 = vsub.f32 %v259, %v1411
    %v1413 = vand.u32 %v1412, 4294901760
    %1414 = vmatmul.mubr.f32.gmra.mrb[0].mxu0 %v1413
    %v1415 = vpop.f32.mrb[0].mxu0
    %v1416 = vadd.f32 %v1117, %v1415
    %v1417 = vpop.f32.mrb[0].mxu0
    %1418 = vmatprep.mubr.f32.mxu0 0.0
    %v1419 = vand.u32 %v262, 4294901760
    %v1420 = vsub.f32 %v262, %v1419
    %v1421 = vand.u32 %v1420, 4294901760
    %1422 = vmatmul.mubr.f32.gmra.mrb[0].mxu0 %v1421
    %v1423 = vpop.f32.mrb[0].mxu0
    %v1424 = vadd.f32 %v1124, %v1423
    %v1425 = vpop.f32.mrb[0].mxu0
    %1426 = vmatprep.mubr.f32.mxu0 0.0
    %v1427 = vand.u32 %v265, 4294901760
    %v1428 = vsub.f32 %v265, %v1427
    %v1429 = vand.u32 %v1428, 4294901760
    %1430 = vmatmul.mubr.f32.gmra.mrb[0].mxu0 %v1429
    %v1431 = vpop.f32.mrb[0].mxu0
    %v1432 = vadd.f32 %v1131, %v1431
    %v1433 = vpop.f32.mrb[0].mxu0
    %1434 = vmatprep.mubr.f32.mxu0 0.0
    %v1435 = vand.u32 %v268, 4294901760
    %v1436 = vsub.f32 %v268, %v1435
    %v1437 = vand.u32 %v1436, 4294901760
    %1438 = vmatmul.mubr.f32.gmra.mrb[0].mxu0 %v1437
    %v1439 = vpop.f32.mrb[0].mxu0
    %v1440 = vadd.f32 %v1138, %v1439
    %v1441 = vpop.f32.mrb[0].mxu0
    %1442 = vmatprep.mubr.f32.mxu0 0.0
    %v1443 = vand.u32 %v271, 4294901760
    %v1444 = vsub.f32 %v271, %v1443
    %v1445 = vand.u32 %v1444, 4294901760
    %1446 = vmatmul.mubr.f32.gmra.mrb[0].mxu0 %v1445
    %v1447 = vpop.f32.mrb[0].mxu0
    %v1448 = vadd.f32 %v1145, %v1447
    %v1449 = vpop.f32.mrb[0].mxu0
    %1450 = vmatprep.mubr.f32.mxu0 0.0
    %v1451 = vand.u32 %v274, 4294901760
    %v1452 = vsub.f32 %v274, %v1451
    %v1453 = vand.u32 %v1452, 4294901760
    %1454 = vmatmul.mubr.f32.gmra.mrb[0].mxu0 %v1453
    %v1455 = vpop.f32.mrb[0].mxu0
    %v1456 = vadd.f32 %v1152, %v1455
    %v1457 = vpop.f32.mrb[0].mxu0
    %1458 = vmatprep.mubr.f32.mxu0 0.0
    %v1459 = vand.u32 %v277, 4294901760
    %v1460 = vsub.f32 %v277, %v1459
    %v1461 = vand.u32 %v1460, 4294901760
    %1462 = vmatmul.mubr.f32.gmra.mrb[0].mxu0 %v1461
    %v1463 = vpop.f32.mrb[0].mxu0
    %v1464 = vadd.f32 %v1159, %v1463
    %v1465 = vpop.f32.mrb[0].mxu0
    %1466 = vmatprep.mubr.f32.mxu0 0.0
    %v1467 = vand.u32 %v280, 4294901760
    %v1468 = vsub.f32 %v280, %v1467
    %v1469 = vand.u32 %v1468, 4294901760
    %1470 = vmatmul.mubr.f32.gmra.mrb[0].mxu0 %v1469
    %v1471 = vpop.f32.mrb[0].mxu0
    %v1472 = vadd.f32 %v1166, %v1471
    %v1473 = vpop.f32.mrb[0].mxu0
    %1474 = vmatprep.mubr.f32.mxu0 0.0
    %v1475 = vand.u32 %v283, 4294901760
    %v1476 = vsub.f32 %v283, %v1475
    %v1477 = vand.u32 %v1476, 4294901760
    %1478 = vmatmul.mubr.f32.gmra.mrb[0].mxu0 %v1477
    %v1479 = vpop.f32.mrb[0].mxu0
    %v1480 = vadd.f32 %v1173, %v1479
    %v1481 = vpop.f32.mrb[0].mxu0
    %1482 = vmatprep.mubr.f32.mxu0 0.0
    %v1483 = vand.u32 %v286, 4294901760
    %v1484 = vsub.f32 %v286, %v1483
    %v1485 = vand.u32 %v1484, 4294901760
    %1486 = vmatmul.mubr.f32.gmra.mrb[0].mxu0 %v1485
    %v1487 = vpop.f32.mrb[0].mxu0
    %v1488 = vadd.f32 %v1180, %v1487
    %v1489 = vpop.f32.mrb[0].mxu0
    %1490 = vmatprep.mubr.f32.mxu0 0.0
    %v1491 = vand.u32 %v289, 4294901760
    %v1492 = vsub.f32 %v289, %v1491
    %v1493 = vand.u32 %v1492, 4294901760
    %1494 = vmatmul.mubr.f32.gmra.mrb[0].mxu0 %v1493
    %v1495 = vpop.f32.mrb[0].mxu0
    %v1496 = vadd.f32 %v1187, %v1495
    %v1497 = vpop.f32.mrb[0].mxu0
    %1498 = vmatprep.mubr.f32.mxu0 0.0
    %v1499 = vand.u32 %v292, 4294901760
    %v1500 = vsub.f32 %v292, %v1499
    %v1501 = vand.u32 %v1500, 4294901760
    %1502 = vmatmul.mubr.f32.gmra.mrb[0].mxu0 %v1501
    %v1503 = vpop.f32.mrb[0].mxu0
    %v1504 = vadd.f32 %v1194, %v1503
    %v1505 = vpop.f32.mrb[0].mxu0
    %1506 = vmatprep.mubr.f32.mxu0 0.0
    %v1507 = vand.u32 %v295, 4294901760
    %v1508 = vsub.f32 %v295, %v1507
    %v1509 = vand.u32 %v1508, 4294901760
    %1510 = vmatmul.mubr.f32.gmra.mrb[0].mxu0 %v1509
    %v1511 = vpop.f32.mrb[0].mxu0
    %v1512 = vadd.f32 %v1201, %v1511
    %v1513 = vpop.f32.mrb[0].mxu0
    %1514 = vmatprep.mubr.f32.mxu0 0.0
    %v1515 = vand.u32 %v298, 4294901760
    %v1516 = vsub.f32 %v298, %v1515
    %v1517 = vand.u32 %v1516, 4294901760
    %1518 = vmatmul.mubr.f32.gmra.mrb[0].mxu0 %v1517
    %v1519 = vpop.f32.mrb[0].mxu0
    %v1520 = vadd.f32 %v1208, %v1519
    %v1521 = vpop.f32.mrb[0].mxu0
    %1522 = vmatprep.mubr.f32.mxu0 0.0
    %v1523 = vand.u32 %v301, 4294901760
    %v1524 = vsub.f32 %v301, %v1523
    %v1525 = vand.u32 %v1524, 4294901760
    %1526 = vmatmul.mubr.f32.gmra.mrb[0].mxu0 %v1525
    %v1527 = vpop.f32.mrb[0].mxu0
    %v1528 = vadd.f32 %v1215, %v1527
    %v1529 = vpop.f32.mrb[0].mxu0
    %1530 = vmatprep.mubr.f32.mxu0 0.0
    %v1531 = vand.u32 %v304, 4294901760
    %v1532 = vsub.f32 %v304, %v1531
    %v1533 = vand.u32 %v1532, 4294901760
    %1534 = vmatmul.mubr.f32.gmra.mrb[0].mxu0 %v1533
    %v1535 = vpop.f32.mrb[0].mxu0
    %v1536 = vadd.f32 %v1222, %v1535
    %v1537 = vpop.f32.mrb[0].mxu0
    %1538 = vmatprep.mubr.f32.mxu0 0.0
    %v1539 = vand.u32 %v307, 4294901760
    %v1540 = vsub.f32 %v307, %v1539
    %v1541 = vand.u32 %v1540, 4294901760
    %1542 = vmatmul.mubr.f32.gmra.mrb[0].mxu0 %v1541
    %v1543 = vpop.f32.mrb[0].mxu0
    %v1544 = vadd.f32 %v1229, %v1543
    %v1545 = vpop.f32.mrb[0].mxu0
    %1546 = vmatprep.mubr.f32.mxu0 0.0
    %v1547 = vand.u32 %v310, 4294901760
    %v1548 = vsub.f32 %v310, %v1547
    %v1549 = vand.u32 %v1548, 4294901760
    %1550 = vmatmul.mubr.f32.gmra.mrb[0].mxu0 %v1549
    %v1551 = vpop.f32.mrb[0].mxu0
    %v1552 = vadd.f32 %v1236, %v1551
    %v1553 = vpop.f32.mrb[0].mxu0
    %1554 = vmatprep.mubr.f32.mxu0 0.0
    %v1555 = vand.u32 %v313, 4294901760
    %v1556 = vsub.f32 %v313, %v1555
    %v1557 = vand.u32 %v1556, 4294901760
    %1558 = vmatmul.mubr.f32.gmra.mrb[0].mxu0 %v1557
    %v1559 = vpop.f32.mrb[0].mxu0
    %v1560 = vadd.f32 %v1243, %v1559
    %v1561 = vpop.f32.mrb[0].mxu0
    %1562 = vmatprep.mubr.f32.mxu0 0.0
    %v1563 = vand.u32 %v316, 4294901760
    %v1564 = vsub.f32 %v316, %v1563
    %v1565 = vand.u32 %v1564, 4294901760
    %1566 = vmatmul.mubr.f32.gmra.mrb[0].mxu0 %v1565
    %v1567 = vpop.f32.mrb[0].mxu0
    %v1568 = vadd.f32 %v1250, %v1567
    %v1569 = vpop.f32.mrb[0].mxu0
    %1570 = vmatprep.mubr.f32.mxu0 0.0
    %v1571 = vand.u32 %v319, 4294901760
    %v1572 = vsub.f32 %v319, %v1571
    %v1573 = vand.u32 %v1572, 4294901760
    %1574 = vmatmul.mubr.f32.gmra.mrb[0].mxu0 %v1573
    %v1575 = vpop.f32.mrb[0].mxu0
    %v1576 = vadd.f32 %v1257, %v1575
    %v1577 = vpop.f32.mrb[0].mxu0
    %1578 = vmatprep.mubr.f32.mxu0 0.0
    %v1579 = vand.u32 %v322, 4294901760
    %v1580 = vsub.f32 %v322, %v1579
    %v1581 = vand.u32 %v1580, 4294901760
    %1582 = vmatmul.mubr.f32.gmra.mrb[0].mxu0 %v1581
    %v1583 = vpop.f32.mrb[0].mxu0
    %v1584 = vadd.f32 %v1264, %v1583
    %v1585 = vpop.f32.mrb[0].mxu0
    %1586 = vmatprep.mubr.f32.mxu0 0.0
    %v1587 = vand.u32 %v325, 4294901760
    %v1588 = vsub.f32 %v325, %v1587
    %v1589 = vand.u32 %v1588, 4294901760
    %1590 = vmatmul.mubr.f32.gmra.mrb[0].mxu0 %v1589
    %v1591 = vpop.f32.mrb[0].mxu0
    %v1592 = vadd.f32 %v1271, %v1591
    %v1593 = vpop.f32.mrb[0].mxu0
    %1594 = vmatprep.mubr.f32.mxu0 0.0
    %v1595 = vand.u32 %v328, 4294901760
    %v1596 = vsub.f32 %v328, %v1595
    %v1597 = vand.u32 %v1596, 4294901760
    %1598 = vmatmul.mubr.f32.gmra.mrb[0].mxu0 %v1597
    %v1599 = vpop.f32.mrb[0].mxu0
    %v1600 = vadd.f32 %v1278, %v1599
    %v1601 = vpop.f32.mrb[0].mxu0
    %1602 = vmatprep.mubr.f32.mxu0 0.0
    %v1603 = vand.u32 %v331, 4294901760
    %v1604 = vsub.f32 %v331, %v1603
    %v1605 = vand.u32 %v1604, 4294901760
    %1606 = vmatmul.mubr.f32.gmra.mrb[0].mxu0 %v1605
    %v1607 = vpop.f32.mrb[0].mxu0
    %v1608 = vadd.f32 %v1285, %v1607
    %v1609 = vpop.f32.mrb[0].mxu0
    %1610 = vmatprep.mubr.f32.mxu0 0.0
    %v1611 = vand.u32 %v334, 4294901760
    %v1612 = vsub.f32 %v334, %v1611
    %v1613 = vand.u32 %v1612, 4294901760
    %1614 = vmatmul.mubr.f32.gmra.mrb[0].mxu0 %v1613
    %v1615 = vpop.f32.mrb[0].mxu0
    %v1616 = vadd.f32 %v1292, %v1615
    %v1617 = vpop.f32.mrb[0].mxu0
    %1618 = vmatprep.mubr.f32.mxu0 0.0
    %v1619 = vand.u32 %v337, 4294901760
    %v1620 = vsub.f32 %v337, %v1619
    %v1621 = vand.u32 %v1620, 4294901760
    %1622 = vmatmul.mubr.f32.gmra.mrb[0].mxu0 %v1621
    %v1623 = vpop.f32.mrb[0].mxu0
    %v1624 = vadd.f32 %v1299, %v1623
    %v1625 = vpop.f32.mrb[0].mxu0
    %1626 = vdwg.mxu0
    %1627 = vmatprep.subr.mxu0 0.0
    %v1628 = vand.u32 %v238, 4294901760
    %v1629 = vsub.f32 %v238, %v1628
    %v1630 = vand.u32 %v1629, 4294901760
    %1631 = vmatpush1.msra.mxu0 %v1630
    %1632 = vmatprep.subr.mxu0 0.0
    %v1633 = vand.u32 %v239, 4294901760
    %v1634 = vsub.f32 %v239, %v1633
    %v1635 = vand.u32 %v1634, 4294901760
    %1636 = vmatpush1.msra.mxu0 %v1635
    %1637 = vmatprep.subr.mxu0 0.0
    %v1638 = vand.u32 %v240, 4294901760
    %v1639 = vsub.f32 %v240, %v1638
    %v1640 = vand.u32 %v1639, 4294901760
    %1641 = vmatpush1.msra.mxu0 %v1640
    %1642 = vmatprep.subr.mxu0 0.0
    %v1643 = vand.u32 %v241, 4294901760
    %v1644 = vsub.f32 %v241, %v1643
    %v1645 = vand.u32 %v1644, 4294901760
    %1646 = vmatpush1.msra.mxu0 %v1645
    %1647 = vmatprep.subr.mxu0 0.0
    %1648 = vmatpush1.msra.mxu0 0.0
    %1649 = vmatprep.subr.mxu0 0.0
    %1650 = vmatpush1.msra.mxu0 0.0
    %1651 = vmatprep.subr.mxu0 0.0
    %1652 = vmatpush1.msra.mxu0 0.0
    %1653 = vmatprep.subr.mxu0 0.0
    %1654 = vmatpush1.msra.mxu0 0.0
    %1655 = vmatprep.subr.mxu0 0.0
    %1656 = vmatpush1.msra.mxu0 0.0
    %1657 = vmatprep.subr.mxu0 0.0
    %1658 = vmatpush1.msra.mxu0 0.0
    %1659 = vmatprep.subr.mxu0 0.0
    %1660 = vmatpush1.msra.mxu0 0.0
    %1661 = vmatprep.subr.mxu0 0.0
    %1662 = vmatpush1.msra.mxu0 0.0
    %1663 = vmatprep.subr.mxu0 0.0
    %1664 = vmatpush1.msra.mxu0 0.0
    %1665 = vmatprep.subr.mxu0 0.0
    %1666 = vmatpush1.msra.mxu0 0.0
    %1667 = vmatprep.subr.mxu0 0.0
    %1668 = vmatpush1.msra.mxu0 0.0
    %1669 = vmatprep.subr.mxu0 0.0
    %1670 = vmatpush1.msra.mxu0 0.0
    %1671 = vmatprep.subr.mxu0 0.0
    %1672 = vmatpush1.msra.mxu0 0.0
    %1673 = vmatprep.subr.mxu0 0.0
    %1674 = vmatpush1.msra.mxu0 0.0
    %1675 = vmatprep.subr.mxu0 0.0
    %1676 = vmatpush1.msra.mxu0 0.0
    %1677 = vmatprep.subr.mxu0 0.0
    %1678 = vmatpush1.msra.mxu0 0.0
    %1679 = vmatprep.subr.mxu0 0.0
    %1680 = vmatpush1.msra.mxu0 0.0
    %1681 = vmatprep.subr.mxu0 0.0
    %1682 = vmatpush1.msra.mxu0 0.0
    %1683 = vmatprep.subr.mxu0 0.0
    %1684 = vmatpush1.msra.mxu0 0.0
    %1685 = vmatprep.subr.mxu0 0.0
    %1686 = vmatpush1.msra.mxu0 0.0
    %1687 = vmatprep.subr.mxu0 0.0
    %1688 = vmatpush1.msra.mxu0 0.0
    %1689 = vmatprep.subr.mxu0 0.0
    %1690 = vmatpush1.msra.mxu0 0.0
    %1691 = vmatprep.subr.mxu0 0.0
    %1692 = vmatpush1.msra.mxu0 0.0
    %1693 = vmatprep.subr.mxu0 0.0
    %1694 = vmatpush1.msra.mxu0 0.0
    %1695 = vmatprep.subr.mxu0 0.0
    %1696 = vmatpush1.msra.mxu0 0.0
    %1697 = vmatprep.subr.mxu0 0.0
    %1698 = vmatpush1.msra.mxu0 0.0
    %1699 = vmatprep.subr.mxu0 0.0
    %1700 = vmatpush1.msra.mxu0 0.0
    %1701 = vmatprep.subr.mxu0 0.0
    %1702 = vmatpush1.msra.mxu0 0.0
    %1703 = vmatprep.mubr.f32.mxu0 0.0
    %v1704 = vand.u32 %v244, 4294901760
    %1705 = vmatmul.mubr.f32.gmra.mrb[0].mxu0 %v1704
    %v1706 = vpop.f32.mrb[0].mxu0
    %v1707 = vadd.f32 %v1376, %v1706
    %v1708 = vpop.f32.mrb[0].mxu0
    %1709 = vmatprep.mubr.f32.mxu0 0.0
    %v1710 = vand.u32 %v247, 4294901760
    %1711 = vmatmul.mubr.f32.gmra.mrb[0].mxu0 %v1710
    %v1712 = vpop.f32.mrb[0].mxu0
    %v1713 = vadd.f32 %v1384, %v1712
    %v1714 = vpop.f32.mrb[0].mxu0
    %1715 = vmatprep.mubr.f32.mxu0 0.0
    %v1716 = vand.u32 %v250, 4294901760
    %1717 = vmatmul.mubr.f32.gmra.mrb[0].mxu0 %v1716
    %v1718 = vpop.f32.mrb[0].mxu0
    %v1719 = vadd.f32 %v1392, %v1718
    %v1720 = vpop.f32.mrb[0].mxu0
    %1721 = vmatprep.mubr.f32.mxu0 0.0
    %v1722 = vand.u32 %v253, 4294901760
    %1723 = vmatmul.mubr.f32.gmra.mrb[0].mxu0 %v1722
    %v1724 = vpop.f32.mrb[0].mxu0
    %v1725 = vadd.f32 %v1400, %v1724
    %v1726 = vpop.f32.mrb[0].mxu0
    %1727 = vmatprep.mubr.f32.mxu0 0.0
    %v1728 = vand.u32 %v256, 4294901760
    %1729 = vmatmul.mubr.f32.gmra.mrb[0].mxu0 %v1728
    %v1730 = vpop.f32.mrb[0].mxu0
    %v1731 = vadd.f32 %v1408, %v1730
    %v1732 = vpop.f32.mrb[0].mxu0
    %1733 = vmatprep.mubr.f32.mxu0 0.0
    %v1734 = vand.u32 %v259, 4294901760
    %1735 = vmatmul.mubr.f32.gmra.mrb[0].mxu0 %v1734
    %v1736 = vpop.f32.mrb[0].mxu0
    %v1737 = vadd.f32 %v1416, %v1736
    %v1738 = vpop.f32.mrb[0].mxu0
    %1739 = vmatprep.mubr.f32.mxu0 0.0
    %v1740 = vand.u32 %v262, 4294901760
    %1741 = vmatmul.mubr.f32.gmra.mrb[0].mxu0 %v1740
    %v1742 = vpop.f32.mrb[0].mxu0
    %v1743 = vadd.f32 %v1424, %v1742
    %v1744 = vpop.f32.mrb[0].mxu0
    %1745 = vmatprep.mubr.f32.mxu0 0.0
    %v1746 = vand.u32 %v265, 4294901760
    %1747 = vmatmul.mubr.f32.gmra.mrb[0].mxu0 %v1746
    %v1748 = vpop.f32.mrb[0].mxu0
    %v1749 = vadd.f32 %v1432, %v1748
    %v1750 = vpop.f32.mrb[0].mxu0
    %1751 = vmatprep.mubr.f32.mxu0 0.0
    %v1752 = vand.u32 %v268, 4294901760
    %1753 = vmatmul.mubr.f32.gmra.mrb[0].mxu0 %v1752
    %v1754 = vpop.f32.mrb[0].mxu0
    %v1755 = vadd.f32 %v1440, %v1754
    %v1756 = vpop.f32.mrb[0].mxu0
    %1757 = vmatprep.mubr.f32.mxu0 0.0
    %v1758 = vand.u32 %v271, 4294901760
    %1759 = vmatmul.mubr.f32.gmra.mrb[0].mxu0 %v1758
    %v1760 = vpop.f32.mrb[0].mxu0
    %v1761 = vadd.f32 %v1448, %v1760
    %v1762 = vpop.f32.mrb[0].mxu0
    %1763 = vmatprep.mubr.f32.mxu0 0.0
    %v1764 = vand.u32 %v274, 4294901760
    %1765 = vmatmul.mubr.f32.gmra.mrb[0].mxu0 %v1764
    %v1766 = vpop.f32.mrb[0].mxu0
    %v1767 = vadd.f32 %v1456, %v1766
    %v1768 = vpop.f32.mrb[0].mxu0
    %1769 = vmatprep.mubr.f32.mxu0 0.0
    %v1770 = vand.u32 %v277, 4294901760
    %1771 = vmatmul.mubr.f32.gmra.mrb[0].mxu0 %v1770
    %v1772 = vpop.f32.mrb[0].mxu0
    %v1773 = vadd.f32 %v1464, %v1772
    %v1774 = vpop.f32.mrb[0].mxu0
    %1775 = vmatprep.mubr.f32.mxu0 0.0
    %v1776 = vand.u32 %v280, 4294901760
    %1777 = vmatmul.mubr.f32.gmra.mrb[0].mxu0 %v1776
    %v1778 = vpop.f32.mrb[0].mxu0
    %v1779 = vadd.f32 %v1472, %v1778
    %v1780 = vpop.f32.mrb[0].mxu0
    %1781 = vmatprep.mubr.f32.mxu0 0.0
    %v1782 = vand.u32 %v283, 4294901760
    %1783 = vmatmul.mubr.f32.gmra.mrb[0].mxu0 %v1782
    %v1784 = vpop.f32.mrb[0].mxu0
    %v1785 = vadd.f32 %v1480, %v1784
    %v1786 = vpop.f32.mrb[0].mxu0
    %1787 = vmatprep.mubr.f32.mxu0 0.0
    %v1788 = vand.u32 %v286, 4294901760
    %1789 = vmatmul.mubr.f32.gmra.mrb[0].mxu0 %v1788
    %v1790 = vpop.f32.mrb[0].mxu0
    %v1791 = vadd.f32 %v1488, %v1790
    %v1792 = vpop.f32.mrb[0].mxu0
    %1793 = vmatprep.mubr.f32.mxu0 0.0
    %v1794 = vand.u32 %v289, 4294901760
    %1795 = vmatmul.mubr.f32.gmra.mrb[0].mxu0 %v1794
    %v1796 = vpop.f32.mrb[0].mxu0
    %v1797 = vadd.f32 %v1496, %v1796
    %v1798 = vpop.f32.mrb[0].mxu0
    %1799 = vmatprep.mubr.f32.mxu0 0.0
    %v1800 = vand.u32 %v292, 4294901760
    %1801 = vmatmul.mubr.f32.gmra.mrb[0].mxu0 %v1800
    %v1802 = vpop.f32.mrb[0].mxu0
    %v1803 = vadd.f32 %v1504, %v1802
    %v1804 = vpop.f32.mrb[0].mxu0
    %1805 = vmatprep.mubr.f32.mxu0 0.0
    %v1806 = vand.u32 %v295, 4294901760
    %1807 = vmatmul.mubr.f32.gmra.mrb[0].mxu0 %v1806
    %v1808 = vpop.f32.mrb[0].mxu0
    %v1809 = vadd.f32 %v1512, %v1808
    %v1810 = vpop.f32.mrb[0].mxu0
    %1811 = vmatprep.mubr.f32.mxu0 0.0
    %v1812 = vand.u32 %v298, 4294901760
    %1813 = vmatmul.mubr.f32.gmra.mrb[0].mxu0 %v1812
    %v1814 = vpop.f32.mrb[0].mxu0
    %v1815 = vadd.f32 %v1520, %v1814
    %v1816 = vpop.f32.mrb[0].mxu0
    %1817 = vmatprep.mubr.f32.mxu0 0.0
    %v1818 = vand.u32 %v301, 4294901760
    %1819 = vmatmul.mubr.f32.gmra.mrb[0].mxu0 %v1818
    %v1820 = vpop.f32.mrb[0].mxu0
    %v1821 = vadd.f32 %v1528, %v1820
    %v1822 = vpop.f32.mrb[0].mxu0
    %1823 = vmatprep.mubr.f32.mxu0 0.0
    %v1824 = vand.u32 %v304, 4294901760
    %1825 = vmatmul.mubr.f32.gmra.mrb[0].mxu0 %v1824
    %v1826 = vpop.f32.mrb[0].mxu0
    %v1827 = vadd.f32 %v1536, %v1826
    %v1828 = vpop.f32.mrb[0].mxu0
    %1829 = vmatprep.mubr.f32.mxu0 0.0
    %v1830 = vand.u32 %v307, 4294901760
    %1831 = vmatmul.mubr.f32.gmra.mrb[0].mxu0 %v1830
    %v1832 = vpop.f32.mrb[0].mxu0
    %v1833 = vadd.f32 %v1544, %v1832
    %v1834 = vpop.f32.mrb[0].mxu0
    %1835 = vmatprep.mubr.f32.mxu0 0.0
    %v1836 = vand.u32 %v310, 4294901760
    %1837 = vmatmul.mubr.f32.gmra.mrb[0].mxu0 %v1836
    %v1838 = vpop.f32.mrb[0].mxu0
    %v1839 = vadd.f32 %v1552, %v1838
    %v1840 = vpop.f32.mrb[0].mxu0
    %1841 = vmatprep.mubr.f32.mxu0 0.0
    %v1842 = vand.u32 %v313, 4294901760
    %1843 = vmatmul.mubr.f32.gmra.mrb[0].mxu0 %v1842
    %v1844 = vpop.f32.mrb[0].mxu0
    %v1845 = vadd.f32 %v1560, %v1844
    %v1846 = vpop.f32.mrb[0].mxu0
    %1847 = vmatprep.mubr.f32.mxu0 0.0
    %v1848 = vand.u32 %v316, 4294901760
    %1849 = vmatmul.mubr.f32.gmra.mrb[0].mxu0 %v1848
    %v1850 = vpop.f32.mrb[0].mxu0
    %v1851 = vadd.f32 %v1568, %v1850
    %v1852 = vpop.f32.mrb[0].mxu0
    %1853 = vmatprep.mubr.f32.mxu0 0.0
    %v1854 = vand.u32 %v319, 4294901760
    %1855 = vmatmul.mubr.f32.gmra.mrb[0].mxu0 %v1854
    %v1856 = vpop.f32.mrb[0].mxu0
    %v1857 = vadd.f32 %v1576, %v1856
    %v1858 = vpop.f32.mrb[0].mxu0
    %1859 = vmatprep.mubr.f32.mxu0 0.0
    %v1860 = vand.u32 %v322, 4294901760
    %1861 = vmatmul.mubr.f32.gmra.mrb[0].mxu0 %v1860
    %v1862 = vpop.f32.mrb[0].mxu0
    %v1863 = vadd.f32 %v1584, %v1862
    %v1864 = vpop.f32.mrb[0].mxu0
    %1865 = vmatprep.mubr.f32.mxu0 0.0
    %v1866 = vand.u32 %v325, 4294901760
    %1867 = vmatmul.mubr.f32.gmra.mrb[0].mxu0 %v1866
    %v1868 = vpop.f32.mrb[0].mxu0
    %v1869 = vadd.f32 %v1592, %v1868
    %v1870 = vpop.f32.mrb[0].mxu0
    %1871 = vmatprep.mubr.f32.mxu0 0.0
    %v1872 = vand.u32 %v328, 4294901760
    %1873 = vmatmul.mubr.f32.gmra.mrb[0].mxu0 %v1872
    %v1874 = vpop.f32.mrb[0].mxu0
    %v1875 = vadd.f32 %v1600, %v1874
    %v1876 = vpop.f32.mrb[0].mxu0
    %1877 = vmatprep.mubr.f32.mxu0 0.0
    %v1878 = vand.u32 %v331, 4294901760
    %1879 = vmatmul.mubr.f32.gmra.mrb[0].mxu0 %v1878
    %v1880 = vpop.f32.mrb[0].mxu0
    %v1881 = vadd.f32 %v1608, %v1880
    %v1882 = vpop.f32.mrb[0].mxu0
    %1883 = vmatprep.mubr.f32.mxu0 0.0
    %v1884 = vand.u32 %v334, 4294901760
    %1885 = vmatmul.mubr.f32.gmra.mrb[0].mxu0 %v1884
    %v1886 = vpop.f32.mrb[0].mxu0
    %v1887 = vadd.f32 %v1616, %v1886
    %v1888 = vpop.f32.mrb[0].mxu0
    %1889 = vmatprep.mubr.f32.mxu0 0.0
    %v1890 = vand.u32 %v337, 4294901760
    %1891 = vmatmul.mubr.f32.gmra.mrb[0].mxu0 %v1890
    %v1892 = vpop.f32.mrb[0].mxu0
    %v1893 = vadd.f32 %v1624, %v1892
    %v1894 = vpop.f32.mrb[0].mxu0
    %1895 = vdwg.mxu0
    %1896 = vmatprep.subr.mxu0 0.0
    %v1897 = vand.u32 %v238, 4294901760
    %1898 = vmatpush1.msra.mxu0 %v1897
    %1899 = vmatprep.subr.mxu0 0.0
    %v1900 = vand.u32 %v239, 4294901760
    %1901 = vmatpush1.msra.mxu0 %v1900
    %1902 = vmatprep.subr.mxu0 0.0
    %v1903 = vand.u32 %v240, 4294901760
    %1904 = vmatpush1.msra.mxu0 %v1903
    %1905 = vmatprep.subr.mxu0 0.0
    %v1906 = vand.u32 %v241, 4294901760
    %1907 = vmatpush1.msra.mxu0 %v1906
    %1908 = vmatprep.subr.mxu0 0.0
    %1909 = vmatpush1.msra.mxu0 0.0
    %1910 = vmatprep.subr.mxu0 0.0
    %1911 = vmatpush1.msra.mxu0 0.0
    %1912 = vmatprep.subr.mxu0 0.0
    %1913 = vmatpush1.msra.mxu0 0.0
    %1914 = vmatprep.subr.mxu0 0.0
    %1915 = vmatpush1.msra.mxu0 0.0
    %1916 = vmatprep.subr.mxu0 0.0
    %1917 = vmatpush1.msra.mxu0 0.0
    %1918 = vmatprep.subr.mxu0 0.0
    %1919 = vmatpush1.msra.mxu0 0.0
    %1920 = vmatprep.subr.mxu0 0.0
    %1921 = vmatpush1.msra.mxu0 0.0
    %1922 = vmatprep.subr.mxu0 0.0
    %1923 = vmatpush1.msra.mxu0 0.0
    %1924 = vmatprep.subr.mxu0 0.0
    %1925 = vmatpush1.msra.mxu0 0.0
    %1926 = vmatprep.subr.mxu0 0.0
    %1927 = vmatpush1.msra.mxu0 0.0
    %1928 = vmatprep.subr.mxu0 0.0
    %1929 = vmatpush1.msra.mxu0 0.0
    %1930 = vmatprep.subr.mxu0 0.0
    %1931 = vmatpush1.msra.mxu0 0.0
    %1932 = vmatprep.subr.mxu0 0.0
    %1933 = vmatpush1.msra.mxu0 0.0
    %1934 = vmatprep.subr.mxu0 0.0
    %1935 = vmatpush1.msra.mxu0 0.0
    %1936 = vmatprep.subr.mxu0 0.0
    %1937 = vmatpush1.msra.mxu0 0.0
    %1938 = vmatprep.subr.mxu0 0.0
    %1939 = vmatpush1.msra.mxu0 0.0
    %1940 = vmatprep.subr.mxu0 0.0
    %1941 = vmatpush1.msra.mxu0 0.0
    %1942 = vmatprep.subr.mxu0 0.0
    %1943 = vmatpush1.msra.mxu0 0.0
    %1944 = vmatprep.subr.mxu0 0.0
    %1945 = vmatpush1.msra.mxu0 0.0
    %1946 = vmatprep.subr.mxu0 0.0
    %1947 = vmatpush1.msra.mxu0 0.0
    %1948 = vmatprep.subr.mxu0 0.0
    %1949 = vmatpush1.msra.mxu0 0.0
    %1950 = vmatprep.subr.mxu0 0.0
    %1951 = vmatpush1.msra.mxu0 0.0
    %1952 = vmatprep.subr.mxu0 0.0
    %1953 = vmatpush1.msra.mxu0 0.0
    %1954 = vmatprep.subr.mxu0 0.0
    %1955 = vmatpush1.msra.mxu0 0.0
    %1956 = vmatprep.subr.mxu0 0.0
    %1957 = vmatpush1.msra.mxu0 0.0
    %1958 = vmatprep.subr.mxu0 0.0
    %1959 = vmatpush1.msra.mxu0 0.0
    %1960 = vmatprep.subr.mxu0 0.0
    %1961 = vmatpush1.msra.mxu0 0.0
    %1962 = vmatprep.subr.mxu0 0.0
    %1963 = vmatpush1.msra.mxu0 0.0
    %1964 = vmatprep.mubr.f32.mxu0 0.0
    %v1965 = vand.u32 %v244, 4294901760
    %1966 = vmatmul.mubr.f32.gmra.mrb[0].mxu0 %v1965
    %v1967 = vpop.f32.mrb[0].mxu0
    %v1968 = vadd.f32 %v1707, %v1967
    %v1969 = vpop.f32.mrb[0].mxu0
    %1970 = vmatprep.mubr.f32.mxu0 0.0
    %v1971 = vand.u32 %v247, 4294901760
    %1972 = vmatmul.mubr.f32.gmra.mrb[0].mxu0 %v1971
    %v1973 = vpop.f32.mrb[0].mxu0
    %v1974 = vadd.f32 %v1713, %v1973
    %v1975 = vpop.f32.mrb[0].mxu0
    %1976 = vmatprep.mubr.f32.mxu0 0.0
    %v1977 = vand.u32 %v250, 4294901760
    %1978 = vmatmul.mubr.f32.gmra.mrb[0].mxu0 %v1977
    %v1979 = vpop.f32.mrb[0].mxu0
    %v1980 = vadd.f32 %v1719, %v1979
    %v1981 = vpop.f32.mrb[0].mxu0
    %1982 = vmatprep.mubr.f32.mxu0 0.0
    %v1983 = vand.u32 %v253, 4294901760
    %1984 = vmatmul.mubr.f32.gmra.mrb[0].mxu0 %v1983
    %v1985 = vpop.f32.mrb[0].mxu0
    %v1986 = vadd.f32 %v1725, %v1985
    %v1987 = vpop.f32.mrb[0].mxu0
    %1988 = vmatprep.mubr.f32.mxu0 0.0
    %v1989 = vand.u32 %v256, 4294901760
    %1990 = vmatmul.mubr.f32.gmra.mrb[0].mxu0 %v1989
    %v1991 = vpop.f32.mrb[0].mxu0
    %v1992 = vadd.f32 %v1731, %v1991
    %v1993 = vpop.f32.mrb[0].mxu0
    %1994 = vmatprep.mubr.f32.mxu0 0.0
    %v1995 = vand.u32 %v259, 4294901760
    %1996 = vmatmul.mubr.f32.gmra.mrb[0].mxu0 %v1995
    %v1997 = vpop.f32.mrb[0].mxu0
    %v1998 = vadd.f32 %v1737, %v1997
    %v1999 = vpop.f32.mrb[0].mxu0
    %2000 = vmatprep.mubr.f32.mxu0 0.0
    %v2001 = vand.u32 %v262, 4294901760
    %2002 = vmatmul.mubr.f32.gmra.mrb[0].mxu0 %v2001
    %v2003 = vpop.f32.mrb[0].mxu0
    %v2004 = vadd.f32 %v1743, %v2003
    %v2005 = vpop.f32.mrb[0].mxu0
    %2006 = vmatprep.mubr.f32.mxu0 0.0
    %v2007 = vand.u32 %v265, 4294901760
    %2008 = vmatmul.mubr.f32.gmra.mrb[0].mxu0 %v2007
    %v2009 = vpop.f32.mrb[0].mxu0
    %v2010 = vadd.f32 %v1749, %v2009
    %v2011 = vpop.f32.mrb[0].mxu0
    %2012 = vmatprep.mubr.f32.mxu0 0.0
    %v2013 = vand.u32 %v268, 4294901760
    %2014 = vmatmul.mubr.f32.gmra.mrb[0].mxu0 %v2013
    %v2015 = vpop.f32.mrb[0].mxu0
    %v2016 = vadd.f32 %v1755, %v2015
    %v2017 = vpop.f32.mrb[0].mxu0
    %2018 = vmatprep.mubr.f32.mxu0 0.0
    %v2019 = vand.u32 %v271, 4294901760
    %2020 = vmatmul.mubr.f32.gmra.mrb[0].mxu0 %v2019
    %v2021 = vpop.f32.mrb[0].mxu0
    %v2022 = vadd.f32 %v1761, %v2021
    %v2023 = vpop.f32.mrb[0].mxu0
    %2024 = vmatprep.mubr.f32.mxu0 0.0
    %v2025 = vand.u32 %v274, 4294901760
    %2026 = vmatmul.mubr.f32.gmra.mrb[0].mxu0 %v2025
    %v2027 = vpop.f32.mrb[0].mxu0
    %v2028 = vadd.f32 %v1767, %v2027
    %v2029 = vpop.f32.mrb[0].mxu0
    %2030 = vmatprep.mubr.f32.mxu0 0.0
    %v2031 = vand.u32 %v277, 4294901760
    %2032 = vmatmul.mubr.f32.gmra.mrb[0].mxu0 %v2031
    %v2033 = vpop.f32.mrb[0].mxu0
    %v2034 = vadd.f32 %v1773, %v2033
    %v2035 = vpop.f32.mrb[0].mxu0
    %2036 = vmatprep.mubr.f32.mxu0 0.0
    %v2037 = vand.u32 %v280, 4294901760
    %2038 = vmatmul.mubr.f32.gmra.mrb[0].mxu0 %v2037
    %v2039 = vpop.f32.mrb[0].mxu0
    %v2040 = vadd.f32 %v1779, %v2039
    %v2041 = vpop.f32.mrb[0].mxu0
    %2042 = vmatprep.mubr.f32.mxu0 0.0
    %v2043 = vand.u32 %v283, 4294901760
    %2044 = vmatmul.mubr.f32.gmra.mrb[0].mxu0 %v2043
    %v2045 = vpop.f32.mrb[0].mxu0
    %v2046 = vadd.f32 %v1785, %v2045
    %v2047 = vpop.f32.mrb[0].mxu0
    %2048 = vmatprep.mubr.f32.mxu0 0.0
    %v2049 = vand.u32 %v286, 4294901760
    %2050 = vmatmul.mubr.f32.gmra.mrb[0].mxu0 %v2049
    %v2051 = vpop.f32.mrb[0].mxu0
    %v2052 = vadd.f32 %v1791, %v2051
    %v2053 = vpop.f32.mrb[0].mxu0
    %2054 = vmatprep.mubr.f32.mxu0 0.0
    %v2055 = vand.u32 %v289, 4294901760
    %2056 = vmatmul.mubr.f32.gmra.mrb[0].mxu0 %v2055
    %v2057 = vpop.f32.mrb[0].mxu0
    %v2058 = vadd.f32 %v1797, %v2057
    %v2059 = vpop.f32.mrb[0].mxu0
    %2060 = vmatprep.mubr.f32.mxu0 0.0
    %v2061 = vand.u32 %v292, 4294901760
    %2062 = vmatmul.mubr.f32.gmra.mrb[0].mxu0 %v2061
    %v2063 = vpop.f32.mrb[0].mxu0
    %v2064 = vadd.f32 %v1803, %v2063
    %v2065 = vpop.f32.mrb[0].mxu0
    %2066 = vmatprep.mubr.f32.mxu0 0.0
    %v2067 = vand.u32 %v295, 4294901760
    %2068 = vmatmul.mubr.f32.gmra.mrb[0].mxu0 %v2067
    %v2069 = vpop.f32.mrb[0].mxu0
    %v2070 = vadd.f32 %v1809, %v2069
    %v2071 = vpop.f32.mrb[0].mxu0
    %2072 = vmatprep.mubr.f32.mxu0 0.0
    %v2073 = vand.u32 %v298, 4294901760
    %2074 = vmatmul.mubr.f32.gmra.mrb[0].mxu0 %v2073
    %v2075 = vpop.f32.mrb[0].mxu0
    %v2076 = vadd.f32 %v1815, %v2075
    %v2077 = vpop.f32.mrb[0].mxu0
    %2078 = vmatprep.mubr.f32.mxu0 0.0
    %v2079 = vand.u32 %v301, 4294901760
    %2080 = vmatmul.mubr.f32.gmra.mrb[0].mxu0 %v2079
    %v2081 = vpop.f32.mrb[0].mxu0
    %v2082 = vadd.f32 %v1821, %v2081
    %v2083 = vpop.f32.mrb[0].mxu0
    %2084 = vmatprep.mubr.f32.mxu0 0.0
    %v2085 = vand.u32 %v304, 4294901760
    %2086 = vmatmul.mubr.f32.gmra.mrb[0].mxu0 %v2085
    %v2087 = vpop.f32.mrb[0].mxu0
    %v2088 = vadd.f32 %v1827, %v2087
    %v2089 = vpop.f32.mrb[0].mxu0
    %2090 = vmatprep.mubr.f32.mxu0 0.0
    %v2091 = vand.u32 %v307, 4294901760
    %2092 = vmatmul.mubr.f32.gmra.mrb[0].mxu0 %v2091
    %v2093 = vpop.f32.mrb[0].mxu0
    %v2094 = vadd.f32 %v1833, %v2093
    %v2095 = vpop.f32.mrb[0].mxu0
    %2096 = vmatprep.mubr.f32.mxu0 0.0
    %v2097 = vand.u32 %v310, 4294901760
    %2098 = vmatmul.mubr.f32.gmra.mrb[0].mxu0 %v2097
    %v2099 = vpop.f32.mrb[0].mxu0
    %v2100 = vadd.f32 %v1839, %v2099
    %v2101 = vpop.f32.mrb[0].mxu0
    %2102 = vmatprep.mubr.f32.mxu0 0.0
    %v2103 = vand.u32 %v313, 4294901760
    %2104 = vmatmul.mubr.f32.gmra.mrb[0].mxu0 %v2103
    %v2105 = vpop.f32.mrb[0].mxu0
    %v2106 = vadd.f32 %v1845, %v2105
    %v2107 = vpop.f32.mrb[0].mxu0
    %2108 = vmatprep.mubr.f32.mxu0 0.0
    %v2109 = vand.u32 %v316, 4294901760
    %2110 = vmatmul.mubr.f32.gmra.mrb[0].mxu0 %v2109
    %v2111 = vpop.f32.mrb[0].mxu0
    %v2112 = vadd.f32 %v1851, %v2111
    %v2113 = vpop.f32.mrb[0].mxu0
    %2114 = vmatprep.mubr.f32.mxu0 0.0
    %v2115 = vand.u32 %v319, 4294901760
    %2116 = vmatmul.mubr.f32.gmra.mrb[0].mxu0 %v2115
    %v2117 = vpop.f32.mrb[0].mxu0
    %v2118 = vadd.f32 %v1857, %v2117
    %v2119 = vpop.f32.mrb[0].mxu0
    %2120 = vmatprep.mubr.f32.mxu0 0.0
    %v2121 = vand.u32 %v322, 4294901760
    %2122 = vmatmul.mubr.f32.gmra.mrb[0].mxu0 %v2121
    %v2123 = vpop.f32.mrb[0].mxu0
    %v2124 = vadd.f32 %v1863, %v2123
    %v2125 = vpop.f32.mrb[0].mxu0
    %2126 = vmatprep.mubr.f32.mxu0 0.0
    %v2127 = vand.u32 %v325, 4294901760
    %2128 = vmatmul.mubr.f32.gmra.mrb[0].mxu0 %v2127
    %v2129 = vpop.f32.mrb[0].mxu0
    %v2130 = vadd.f32 %v1869, %v2129
    %v2131 = vpop.f32.mrb[0].mxu0
    %2132 = vmatprep.mubr.f32.mxu0 0.0
    %v2133 = vand.u32 %v328, 4294901760
    %2134 = vmatmul.mubr.f32.gmra.mrb[0].mxu0 %v2133
    %v2135 = vpop.f32.mrb[0].mxu0
    %v2136 = vadd.f32 %v1875, %v2135
    %v2137 = vpop.f32.mrb[0].mxu0
    %2138 = vmatprep.mubr.f32.mxu0 0.0
    %v2139 = vand.u32 %v331, 4294901760
    %2140 = vmatmul.mubr.f32.gmra.mrb[0].mxu0 %v2139
    %v2141 = vpop.f32.mrb[0].mxu0
    %v2142 = vadd.f32 %v1881, %v2141
    %v2143 = vpop.f32.mrb[0].mxu0
    %2144 = vmatprep.mubr.f32.mxu0 0.0
    %v2145 = vand.u32 %v334, 4294901760
    %2146 = vmatmul.mubr.f32.gmra.mrb[0].mxu0 %v2145
    %v2147 = vpop.f32.mrb[0].mxu0
    %v2148 = vadd.f32 %v1887, %v2147
    %v2149 = vpop.f32.mrb[0].mxu0
    %2150 = vmatprep.mubr.f32.mxu0 0.0
    %v2151 = vand.u32 %v337, 4294901760
    %2152 = vmatmul.mubr.f32.gmra.mrb[0].mxu0 %v2151
    %v2153 = vpop.f32.mrb[0].mxu0
    %v2154 = vadd.f32 %v1893, %v2153
    %v2155 = vpop.f32.mrb[0].mxu0
    %2156 = vdwg.mxu0
    %2157 = vst [vmem:[#allocation2] sm:$0xff] %v1968
    %2158 = vst [vmem:[#allocation2 + $0x8] sm:$0xff] %v1974
    %2159 = vst [vmem:[#allocation2 + $0x10] sm:$0xff] %v1980
    %2160 = vst [vmem:[#allocation2 + $0x18] sm:$0xff] %v1986
    %2161 = vst [vmem:[#allocation2 + $0x20] sm:$0xff] %v1992
    %2162 = vst [vmem:[#allocation2 + $0x28] sm:$0xff] %v1998
    %2163 = vst [vmem:[#allocation2 + $0x30] sm:$0xff] %v2004
    %2164 = vst [vmem:[#allocation2 + $0x38] sm:$0xff] %v2010
    %2165 = vst [vmem:[#allocation2 + $0x40] sm:$0xff] %v2016
    %2166 = vst [vmem:[#allocation2 + $0x48] sm:$0xff] %v2022
    %2167 = vst [vmem:[#allocation2 + $0x50] sm:$0xff] %v2028
    %2168 = vst [vmem:[#allocation2 + $0x58] sm:$0xff] %v2034
    %2169 = vst [vmem:[#allocation2 + $0x60] sm:$0xff] %v2040
    %2170 = vst [vmem:[#allocation2 + $0x68] sm:$0xff] %v2046
    %2171 = vst [vmem:[#allocation2 + $0x70] sm:$0xff] %v2052
    %2172 = vst [vmem:[#allocation2 + $0x78] sm:$0xff] %v2058
    %2173 = vst [vmem:[#allocation2 + $0x80] sm:$0xff] %v2064
    %2174 = vst [vmem:[#allocation2 + $0x88] sm:$0xff] %v2070
    %2175 = vst [vmem:[#allocation2 + $0x90] sm:$0xff] %v2076
    %2176 = vst [vmem:[#allocation2 + $0x98] sm:$0xff] %v2082
    %2177 = vst [vmem:[#allocation2 + $0xa0] sm:$0xff] %v2088
    %2178 = vst [vmem:[#allocation2 + $0xa8] sm:$0xff] %v2094
    %2179 = vst [vmem:[#allocation2 + $0xb0] sm:$0xff] %v2100
    %2180 = vst [vmem:[#allocation2 + $0xb8] sm:$0xff] %v2106
    %2181 = vst [vmem:[#allocation2 + $0xc0] sm:$0xff] %v2112
    %2182 = vst [vmem:[#allocation2 + $0xc8] sm:$0xff] %v2118
    %2183 = vst [vmem:[#allocation2 + $0xd0] sm:$0xff] %v2124
    %2184 = vst [vmem:[#allocation2 + $0xd8] sm:$0xff] %v2130
    %2185 = vst [vmem:[#allocation2 + $0xe0] sm:$0xff] %v2136
    %2186 = vst [vmem:[#allocation2 + $0xe8] sm:$0xff] %v2142
    %2187 = vst [vmem:[#allocation2 + $0xf0] sm:$0xff] %v2148
    %2188 = vst [vmem:[#allocation2 + $0xf8] sm:$0xff] %v2154
    // Predicated region
    $region10: #{tpu_custom_call.1} parent=1 // pred_check
      _
    $region11: #{tpu_custom_call.1} parent=1 // pred_check_branch
      %2190 = sbr.rel (0) target = $region13
    $region12: #{tpu_custom_call.1} parent=1 // pred_region
      %s2192 = ssub.s32 4096, 4096
      %2193 = vsyncadd [#allocation3], %s2192
      %s2194 = sshll.u32 [#allocation2], 4
      %s2195 = int_to_ptr.vmem [resolvable:$true] %s2194
      %2200 = dma.vmem_to_hbm [thread:$0]  %s2195, 4096, %s2, [#allocation3], 128, 128, 8
    $region13: #{tpu_custom_call.1} parent=1 // pred_fallthru
      _
    // Predicated region
    $region14: #{tpu_custom_call.1} parent=1 // pred_check
      _
    $region15: #{tpu_custom_call.1} parent=1 // pred_check_branch
      %2202 = sbr.rel (0) target = $region17
    $region16: #{tpu_custom_call.1} parent=1 // pred_region
      %2203 = dma.done [#allocation3], 4096
    $region17: #{tpu_custom_call.1} parent=1 // pred_fallthru
      _
    %2204 = vsyncpa [#allocation3], 1

</llo_original>
